<compile_context>
chip_gen: v7x
topology: tpu7x:2x2x1
jax: 0.10.0
libtpu: 0.0.40
codegen_flags: <defaults>
</compile_context>

<pallas_src>
import functools

import jax
import jax.numpy as jnp
from jax.experimental import pallas as pl
from jax.experimental.pallas import tpu as pltpu

HIDDEN = (512, 256, 128, 64, 1)


def _mlp_kernel(x_ref,
                w1_ref, b1_ref,
                w2_ref, b2_ref,
                w3_ref, b3_ref,
                w4_ref, b4_ref,
                w5_ref, b5_ref,
                o_ref):
    """Fused 5-layer MLP for one batch tile.

    x_ref:  (block_b, F)     compute dtype (bf16 by default)
    wN_ref: (in, out)        compute dtype (layers 1-4, MXU path)
    bN_ref: (1, out)         f32
    w5_ref: (1, 64)          f32 head weight stored as a row
    b5_ref: (1, 1)           f32
    o_ref:  (1, 1, block_b)  f32, batch on the lane axis (lane-dense output)
    """
    # Layer 1: (block_b, F) @ (F, 512) -- MXU, f32 accumulation.
    h = jnp.dot(x_ref[...], w1_ref[...], preferred_element_type=jnp.float32)
    h = jnp.maximum(h + b1_ref[...], 0.0)

    # Layer 2: (block_b, 512) @ (512, 256)
    h = jnp.dot(h.astype(w2_ref.dtype), w2_ref[...],
                preferred_element_type=jnp.float32)
    h = jnp.maximum(h + b2_ref[...], 0.0)

    # Layer 3: (block_b, 256) @ (256, 128)
    h = jnp.dot(h.astype(w3_ref.dtype), w3_ref[...],
                preferred_element_type=jnp.float32)
    h = jnp.maximum(h + b3_ref[...], 0.0)

    # Layer 4: (block_b, 128) @ (128, 64)
    h = jnp.dot(h.astype(w4_ref.dtype), w4_ref[...],
                preferred_element_type=jnp.float32)
    h = jnp.maximum(h + b4_ref[...], 0.0)

    # Layer 5 head (64 -> 1): VPU multiply + lane reduction (XLU); no MXU op.
    head = jnp.sum(h * w5_ref[...], axis=-1)        # (block_b,) f32
    head = head.reshape(1, -1) + b5_ref[...]        # (1, block_b), batch on lanes
    o_ref[...] = head.reshape(o_ref.shape).astype(o_ref.dtype)


def _const_spec(shape):
    """BlockSpec for an operand kept fully resident in VMEM (constant block)."""
    zeros = (0,) * len(shape)
    return pl.BlockSpec(shape, lambda i: zeros)


def _round_up(n, m):
    return -(-n // m) * m


@functools.partial(jax.jit, static_argnames=("block_b", "compute_dtype"))
def complex_linear_regression(x, params, *, block_b=256,
                              compute_dtype=jnp.bfloat16):
    """x: (B, input_size) f32. params: list of (W, b), W (in, out), b (1, out).

    block_b: batch tile. Prefer a multiple of 256 on v6e/v7x, 128 on v5e.
             Sweep 256-1024 for large batches; for v7x keep padded_B >= 2*block_b
             so both TensorCores get grid steps.
    """
    B, F = x.shape

    # Clamp the tile to the (128-aligned) batch so tiny batches don't over-pad,
    # then pad the batch so every grid step sees a full (block_b, F) tile.
    block_b = max(128, min(block_b, _round_up(B, 128)))
    block_b = _round_up(block_b, 128)
    padded_B = _round_up(B, block_b)
    num_tiles = padded_B // block_b
    if padded_B != B:
        x = jnp.pad(x, ((0, padded_B - B), (0, 0)))
    x_c = x.astype(compute_dtype)

    (w1, b1), (w2, b2), (w3, b3), (w4, b4), (w5, b5) = params
    # MXU-path weights in the compute dtype; head weight as an f32 (1, 64) row.
    w1c, w2c, w3c, w4c = (w.astype(compute_dtype) for w in (w1, w2, w3, w4))
    w5_row = jnp.transpose(w5)  # (1, 64), stays f32

    operands = [x_c, w1c, b1, w2c, b2, w3c, b3, w4c, b4, w5_row, b5]

    in_specs = [pl.BlockSpec((block_b, F), lambda i: (i, 0))]
    in_specs += [_const_spec(op.shape) for op in operands[1:]]

    out = pl.pallas_call(
        _mlp_kernel,
        out_shape=jax.ShapeDtypeStruct((num_tiles, 1, block_b), jnp.float32),
        grid_spec=pltpu.PrefetchScalarGridSpec(
            num_scalar_prefetch=0,
            grid=(num_tiles,),
            in_specs=in_specs,
            out_specs=pl.BlockSpec((1, 1, block_b), lambda i: (i, 0, 0)),
        ),
        compiler_params=pltpu.CompilerParams(
            dimension_semantics=("parallel",),
        ),
    )(*operands)

    # Lane-dense tiles back to a (B, 1) column; drop batch padding.
    return out.reshape(padded_B, 1)[:B]


def init_params(key, input_size):
    """Init matching PyTorch nn.Linear default U(-1/sqrt(in), 1/sqrt(in))."""
    dims = (input_size,) + HIDDEN
    params = []
    for i in range(len(HIDDEN)):
        fan_in, fan_out = dims[i], dims[i + 1]
        key, kw, kb = jax.random.split(key, 3)
        bound = 1.0 / jnp.sqrt(float(fan_in))
        w = jax.random.uniform(kw, (fan_in, fan_out), jnp.float32, -bound, bound)
        b = jax.random.uniform(kb, (1, fan_out), jnp.float32, -bound, bound)
        params.append((w, b))
    return params


def reference_mlp(x, params, compute_dtype=jnp.bfloat16):
    """Pure-JAX reference with the same precision policy as the kernel."""
    (w1, b1), (w2, b2), (w3, b3), (w4, b4), (w5, b5) = params
    h = x
    for (w, b) in ((w1, b1), (w2, b2), (w3, b3), (w4, b4)):
        h = jnp.dot(h.astype(compute_dtype), w.astype(compute_dtype),
                    preferred_element_type=jnp.float32)
        h = jnp.maximum(h + b, 0.0)
    # Head in f32, mirroring the kernel's lane reduction.
    return jnp.sum(h * jnp.transpose(w5), axis=-1, keepdims=True) + b5


if __name__ == "__main__":
    key = jax.random.PRNGKey(0)
    k_x, k_p = jax.random.split(key)

    batch = 8
    input_size = 32
    x = jax.random.normal(k_x, (batch, input_size), jnp.float32)
    params = init_params(k_p, input_size)

    y = complex_linear_regression(x, params)   # tile auto-clamped to 128 here
    y = jax.block_until_ready(y)

    y_ref = reference_mlp(x, params)
    assert y.shape == (batch, 1), y.shape
    # bf16 matmul inputs with f32 accumulation; compared against a
    # precision-matched reference.
    assert jnp.allclose(y, y_ref, atol=5e-3, rtol=5e-3), (y, y_ref)

    print("KERNEL_OK")
</pallas_src>

<mosaic_0001>
module attributes {stable_mosaic.version = 11 : i64} {
  func.func @_mlp_kernel(%arg0: i32, %arg1: memref<128x32xbf16, #tpu.memory_space<vmem>>, %arg2: memref<32x512xbf16, #tpu.memory_space<vmem>>, %arg3: memref<1x512xf32, #tpu.memory_space<vmem>>, %arg4: memref<512x256xbf16, #tpu.memory_space<vmem>>, %arg5: memref<1x256xf32, #tpu.memory_space<vmem>>, %arg6: memref<256x128xbf16, #tpu.memory_space<vmem>>, %arg7: memref<1x128xf32, #tpu.memory_space<vmem>>, %arg8: memref<128x64xbf16, #tpu.memory_space<vmem>>, %arg9: memref<1x64xf32, #tpu.memory_space<vmem>>, %arg10: memref<1x64xf32, #tpu.memory_space<vmem>>, %arg11: memref<1x1xf32, #tpu.memory_space<vmem>>, %arg12: memref<1x1x128xf32, #tpu.memory_space<vmem>>) attributes {dimension_semantics = [#tpu.dimension_semantics<parallel>], iteration_bounds = array<i64: 1>, scalar_prefetch = 0 : i64, scratch_operands = 0 : i64, tpu.core_type = #tpu.core_type<tc>, window_params = [{transform_indices = @transform_0, window_bounds = array<i64: 128, 32>}, {pipeline_mode = #tpu.pipeline_mode<synchronous>, transform_indices = @transform_1, window_bounds = array<i64: 32, 512>}, {pipeline_mode = #tpu.pipeline_mode<synchronous>, transform_indices = @transform_2, window_bounds = array<i64: 1, 512>}, {pipeline_mode = #tpu.pipeline_mode<synchronous>, transform_indices = @transform_3, window_bounds = array<i64: 512, 256>}, {pipeline_mode = #tpu.pipeline_mode<synchronous>, transform_indices = @transform_4, window_bounds = array<i64: 1, 256>}, {pipeline_mode = #tpu.pipeline_mode<synchronous>, transform_indices = @transform_5, window_bounds = array<i64: 256, 128>}, {pipeline_mode = #tpu.pipeline_mode<synchronous>, transform_indices = @transform_6, window_bounds = array<i64: 1, 128>}, {pipeline_mode = #tpu.pipeline_mode<synchronous>, transform_indices = @transform_7, window_bounds = array<i64: 128, 64>}, {pipeline_mode = #tpu.pipeline_mode<synchronous>, transform_indices = @transform_8, window_bounds = array<i64: 1, 64>}, {pipeline_mode = #tpu.pipeline_mode<synchronous>, transform_indices = @transform_9, window_bounds = array<i64: 1, 64>}, {pipeline_mode = #tpu.pipeline_mode<synchronous>, transform_indices = @transform_10, window_bounds = array<i64: 1, 1>}, {transform_indices = @transform_11, window_bounds = array<i64: 1, 1, 128>}]} {
    %c0 = arith.constant 0 : index
    %c0_0 = arith.constant 0 : index
    %0 = vector.load %arg1[%c0, %c0_0] : memref<128x32xbf16, #tpu.memory_space<vmem>>, vector<128x32xbf16>
    %c0_1 = arith.constant 0 : index
    %c0_2 = arith.constant 0 : index
    %1 = vector.load %arg2[%c0_1, %c0_2] : memref<32x512xbf16, #tpu.memory_space<vmem>>, vector<32x512xbf16>
    %cst = arith.constant dense<0.000000e+00> : vector<128x512xf32>
    %2 = tpu.matmul %0, %1, %cst {dimension_numbers = #tpu.dot_dimension_numbers<[1], [0], [0], [1], [0, 0, 1, 1], [], []>} : vector<128x32xbf16>, vector<32x512xbf16>, vector<128x512xf32> -> vector<128x512xf32>
    %c0_3 = arith.constant 0 : index
    %c0_4 = arith.constant 0 : index
    %3 = vector.load %arg3[%c0_3, %c0_4] : memref<1x512xf32, #tpu.memory_space<vmem>>, vector<1x512xf32>
    %4 = vector.broadcast %3 : vector<1x512xf32> to vector<128x512xf32>
    %5 = arith.addf %2, %4 : vector<128x512xf32>
    %cst_5 = arith.constant 0.000000e+00 : f32
    %6 = vector.broadcast %cst_5 : f32 to vector<128x512xf32>
    %7 = arith.maximumf %5, %6 : vector<128x512xf32>
    %8 = arith.truncf %7 : vector<128x512xf32> to vector<128x512xbf16>
    %c0_6 = arith.constant 0 : index
    %c0_7 = arith.constant 0 : index
    %9 = vector.load %arg4[%c0_6, %c0_7] : memref<512x256xbf16, #tpu.memory_space<vmem>>, vector<512x256xbf16>
    %cst_8 = arith.constant dense<0.000000e+00> : vector<128x256xf32>
    %10 = tpu.matmul %8, %9, %cst_8 {dimension_numbers = #tpu.dot_dimension_numbers<[1], [0], [0], [1], [0, 0, 1, 1], [], []>} : vector<128x512xbf16>, vector<512x256xbf16>, vector<128x256xf32> -> vector<128x256xf32>
    %c0_9 = arith.constant 0 : index
    %c0_10 = arith.constant 0 : index
    %11 = vector.load %arg5[%c0_9, %c0_10] : memref<1x256xf32, #tpu.memory_space<vmem>>, vector<1x256xf32>
    %12 = vector.broadcast %11 : vector<1x256xf32> to vector<128x256xf32>
    %13 = arith.addf %10, %12 : vector<128x256xf32>
    %cst_11 = arith.constant 0.000000e+00 : f32
    %14 = vector.broadcast %cst_11 : f32 to vector<128x256xf32>
    %15 = arith.maximumf %13, %14 : vector<128x256xf32>
    %16 = arith.truncf %15 : vector<128x256xf32> to vector<128x256xbf16>
    %c0_12 = arith.constant 0 : index
    %c0_13 = arith.constant 0 : index
    %17 = vector.load %arg6[%c0_12, %c0_13] : memref<256x128xbf16, #tpu.memory_space<vmem>>, vector<256x128xbf16>
    %cst_14 = arith.constant dense<0.000000e+00> : vector<128x128xf32>
    %18 = tpu.matmul %16, %17, %cst_14 {dimension_numbers = #tpu.dot_dimension_numbers<[1], [0], [0], [1], [0, 0, 1, 1], [], []>} : vector<128x256xbf16>, vector<256x128xbf16>, vector<128x128xf32> -> vector<128x128xf32>
    %c0_15 = arith.constant 0 : index
    %c0_16 = arith.constant 0 : index
    %19 = vector.load %arg7[%c0_15, %c0_16] : memref<1x128xf32, #tpu.memory_space<vmem>>, vector<1x128xf32>
    %20 = vector.broadcast %19 : vector<1x128xf32> to vector<128x128xf32>
    %21 = arith.addf %18, %20 : vector<128x128xf32>
    %cst_17 = arith.constant 0.000000e+00 : f32
    %22 = vector.broadcast %cst_17 : f32 to vector<128x128xf32>
    %23 = arith.maximumf %21, %22 : vector<128x128xf32>
    %24 = arith.truncf %23 : vector<128x128xf32> to vector<128x128xbf16>
    %c0_18 = arith.constant 0 : index
    %c0_19 = arith.constant 0 : index
    %25 = vector.load %arg8[%c0_18, %c0_19] : memref<128x64xbf16, #tpu.memory_space<vmem>>, vector<128x64xbf16>
    %cst_20 = arith.constant dense<0.000000e+00> : vector<128x64xf32>
    %26 = tpu.matmul %24, %25, %cst_20 {dimension_numbers = #tpu.dot_dimension_numbers<[1], [0], [0], [1], [0, 0, 1, 1], [], []>} : vector<128x128xbf16>, vector<128x64xbf16>, vector<128x64xf32> -> vector<128x64xf32>
    %c0_21 = arith.constant 0 : index
    %c0_22 = arith.constant 0 : index
    %27 = vector.load %arg9[%c0_21, %c0_22] : memref<1x64xf32, #tpu.memory_space<vmem>>, vector<1x64xf32>
    %28 = vector.broadcast %27 : vector<1x64xf32> to vector<128x64xf32>
    %29 = arith.addf %26, %28 : vector<128x64xf32>
    %cst_23 = arith.constant 0.000000e+00 : f32
    %30 = vector.broadcast %cst_23 : f32 to vector<128x64xf32>
    %31 = arith.maximumf %29, %30 : vector<128x64xf32>
    %c0_24 = arith.constant 0 : index
    %c0_25 = arith.constant 0 : index
    %32 = vector.load %arg10[%c0_24, %c0_25] : memref<1x64xf32, #tpu.memory_space<vmem>>, vector<1x64xf32>
    %33 = vector.broadcast %32 : vector<1x64xf32> to vector<128x64xf32>
    %34 = arith.mulf %31, %33 : vector<128x64xf32>
    %cst_26 = arith.constant dense<0.000000e+00> : vector<128xf32>
    %35 = vector.multi_reduction <add>, %34, %cst_26 [1] : vector<128x64xf32> to vector<128xf32>
    %36 = vector.shape_cast %35 : vector<128xf32> to vector<1x128xf32>
    %c0_27 = arith.constant 0 : index
    %c0_28 = arith.constant 0 : index
    %37 = vector.load %arg11[%c0_27, %c0_28] : memref<1x1xf32, #tpu.memory_space<vmem>>, vector<1x1xf32>
    %38 = vector.broadcast %37 : vector<1x1xf32> to vector<1x128xf32>
    %39 = arith.addf %36, %38 : vector<1x128xf32>
    %40 = vector.shape_cast %39 : vector<1x128xf32> to vector<1x1x128xf32>
    %c0_29 = arith.constant 0 : index
    %c0_30 = arith.constant 0 : index
    %c0_31 = arith.constant 0 : index
    %41 = vector.load %arg12[%c0_29, %c0_30, %c0_31] : memref<1x1x128xf32, #tpu.memory_space<vmem>>, vector<1x1x128xf32>
    tpu.vector_store %arg12[%c0_29, %c0_30, %c0_31], %40 {strides = array<i32>} : memref<1x1x128xf32, #tpu.memory_space<vmem>>, vector<1x1x128xf32>,
    return
  }
  func.func @transform_0(%arg0: i32) -> (i32, i32) {
    %c0_i32 = arith.constant 0 : i32
    %c0_i32_0 = arith.constant 0 : i32
    return %arg0, %c0_i32 : i32, i32
  }
  func.func @transform_1(%arg0: i32) -> (i32, i32) {
    %c0_i32 = arith.constant 0 : i32
    %c0_i32_0 = arith.constant 0 : i32
    %c0_i32_1 = arith.constant 0 : i32
    return %c0_i32, %c0_i32_0 : i32, i32
  }
  func.func @transform_2(%arg0: i32) -> (i32, i32) {
    %c0_i32 = arith.constant 0 : i32
    %c0_i32_0 = arith.constant 0 : i32
    %c0_i32_1 = arith.constant 0 : i32
    return %c0_i32, %c0_i32_0 : i32, i32
  }
  func.func @transform_3(%arg0: i32) -> (i32, i32) {
    %c0_i32 = arith.constant 0 : i32
    %c0_i32_0 = arith.constant 0 : i32
    %c0_i32_1 = arith.constant 0 : i32
    return %c0_i32, %c0_i32_0 : i32, i32
  }
  func.func @transform_4(%arg0: i32) -> (i32, i32) {
    %c0_i32 = arith.constant 0 : i32
    %c0_i32_0 = arith.constant 0 : i32
    %c0_i32_1 = arith.constant 0 : i32
    return %c0_i32, %c0_i32_0 : i32, i32
  }
  func.func @transform_5(%arg0: i32) -> (i32, i32) {
    %c0_i32 = arith.constant 0 : i32
    %c0_i32_0 = arith.constant 0 : i32
    %c0_i32_1 = arith.constant 0 : i32
    return %c0_i32, %c0_i32_0 : i32, i32
  }
  func.func @transform_6(%arg0: i32) -> (i32, i32) {
    %c0_i32 = arith.constant 0 : i32
    %c0_i32_0 = arith.constant 0 : i32
    %c0_i32_1 = arith.constant 0 : i32
    return %c0_i32, %c0_i32_0 : i32, i32
  }
  func.func @transform_7(%arg0: i32) -> (i32, i32) {
    %c0_i32 = arith.constant 0 : i32
    %c0_i32_0 = arith.constant 0 : i32
    %c0_i32_1 = arith.constant 0 : i32
    return %c0_i32, %c0_i32_0 : i32, i32
  }
  func.func @transform_8(%arg0: i32) -> (i32, i32) {
    %c0_i32 = arith.constant 0 : i32
    %c0_i32_0 = arith.constant 0 : i32
    %c0_i32_1 = arith.constant 0 : i32
    return %c0_i32, %c0_i32_0 : i32, i32
  }
  func.func @transform_9(%arg0: i32) -> (i32, i32) {
    %c0_i32 = arith.constant 0 : i32
    %c0_i32_0 = arith.constant 0 : i32
    %c0_i32_1 = arith.constant 0 : i32
    return %c0_i32, %c0_i32_0 : i32, i32
  }
  func.func @transform_10(%arg0: i32) -> (i32, i32) {
    %c0_i32 = arith.constant 0 : i32
    %c0_i32_0 = arith.constant 0 : i32
    %c0_i32_1 = arith.constant 0 : i32
    return %c0_i32, %c0_i32_0 : i32, i32
  }
  func.func @transform_11(%arg0: i32) -> (i32, i32, i32) {
    %c0_i32 = arith.constant 0 : i32
    %c0_i32_0 = arith.constant 0 : i32
    %c0_i32_1 = arith.constant 0 : i32
    return %arg0, %c0_i32, %c0_i32_0 : i32, i32, i32
  }
}

</mosaic_0001>

<llo_original>
// kernel: complex_linear_regression.1
$region0: #{complex_linear_regression.1}
  #allocation0 [shape = 'u32[]', space=smem, size = 0x4, offset = 0x4, fixed_abs, tag = 'smem constant byte address 0x4 - core index']
  #allocation1 [shape = 'u32[144,128]{1,0:T(1,128)}', space=vmem, size = 0x12000, scoped, tag = 'internal scratch']
  #allocation2 [shape = 'f32[1,1]{1,0:T(1,128)S(1)}', space=vmem, size = 0x200, scoped, tag = 'scoped memory for complex_linear_regression.1']
  %s0 = inlined_call_operand.vmem [shape: bf16[128,32], index: 0, kind: input, shape index: {}]
  %s1 = inlined_call_operand.vmem [shape: bf16[32,512], index: 1, kind: input, shape index: {}]
  %s2 = inlined_call_operand.vmem [shape: f32[1,512], index: 2, kind: input, shape index: {}]
  %s3 = inlined_call_operand.vmem [shape: bf16[512,256], index: 3, kind: input, shape index: {}]
  %s4 = inlined_call_operand.vmem [shape: f32[1,256], index: 4, kind: input, shape index: {}]
  %s5 = inlined_call_operand.vmem [shape: bf16[256,128], index: 5, kind: input, shape index: {}]
  %s6 = inlined_call_operand.vmem [shape: f32[1,128], index: 6, kind: input, shape index: {}]
  %s7 = inlined_call_operand.vmem [shape: bf16[128,64], index: 7, kind: input, shape index: {}]
  %s8 = inlined_call_operand.vmem [shape: f32[1,64], index: 8, kind: input, shape index: {}]
  %s9 = inlined_call_operand.vmem [shape: f32[1,64], index: 9, kind: input, shape index: {}]
  %s10 = inlined_call_operand.<no memory space> [shape: f32[1,1], index: 10, kind: input, shape index: {}]
  %s11 = inlined_call_operand.vmem [shape: f32[1,1,128], index: 11, kind: output, shape index: {}]
  %s12 = sld [smem:[#allocation0]]
  $region54: #{complex_linear_regression.1} parent=0
    _
  %s14 = ssub.s32 1, %s12
  %s15 = scalar_select 0, %s14, %s12
  %v16 = vstv %s10
  %17 = vst [vmem:[#allocation2] sm:$0x1] %v16
  // Predicated region
  $region2: #{complex_linear_regression.1} parent=0 // pred_check
    _
  $region3: #{complex_linear_regression.1} parent=0 // pred_check_branch
    %19 = sbr.rel (0) target = $region5
  $region4: #{complex_linear_regression.1} parent=0 // pred_region
    _
  $region5: #{complex_linear_regression.1} parent=0 // pred_fallthru
    _
  // Predicated region
  $region6: #{complex_linear_regression.1} parent=0 // pred_check
    _
  $region7: #{complex_linear_regression.1} parent=0 // pred_check_branch
    %21 = sbr.rel (0) target = $region9
  $region8: #{complex_linear_regression.1} parent=0 // pred_region
    _
  $region9: #{complex_linear_regression.1} parent=0 // pred_fallthru
    _
  // Predicated region
  $region10: #{complex_linear_regression.1} parent=0 // pred_check
    _
  $region11: #{complex_linear_regression.1} parent=0 // pred_check_branch
    %23 = sbr.rel (0) target = $region13
  $region12: #{complex_linear_regression.1} parent=0 // pred_region
    _
  $region13: #{complex_linear_regression.1} parent=0 // pred_fallthru
    _
  // Predicated region
  $region14: #{complex_linear_regression.1} parent=0 // pred_check
    _
  $region15: #{complex_linear_regression.1} parent=0 // pred_check_branch
    %25 = sbr.rel (0) target = $region17
  $region16: #{complex_linear_regression.1} parent=0 // pred_region
    _
  $region17: #{complex_linear_regression.1} parent=0 // pred_fallthru
    _
  // Predicated region
  $region18: #{complex_linear_regression.1} parent=0 // pred_check
    _
  $region19: #{complex_linear_regression.1} parent=0 // pred_check_branch
    %27 = sbr.rel (0) target = $region21
  $region20: #{complex_linear_regression.1} parent=0 // pred_region
    _
  $region21: #{complex_linear_regression.1} parent=0 // pred_fallthru
    _
  // Predicated region
  $region22: #{complex_linear_regression.1} parent=0 // pred_check
    _
  $region23: #{complex_linear_regression.1} parent=0 // pred_check_branch
    %29 = sbr.rel (0) target = $region25
  $region24: #{complex_linear_regression.1} parent=0 // pred_region
    _
  $region25: #{complex_linear_regression.1} parent=0 // pred_fallthru
    _
  // Predicated region
  $region26: #{complex_linear_regression.1} parent=0 // pred_check
    _
  $region27: #{complex_linear_regression.1} parent=0 // pred_check_branch
    %31 = sbr.rel (0) target = $region29
  $region28: #{complex_linear_regression.1} parent=0 // pred_region
    _
  $region29: #{complex_linear_regression.1} parent=0 // pred_fallthru
    _
  // Predicated region
  $region30: #{complex_linear_regression.1} parent=0 // pred_check
    _
  $region31: #{complex_linear_regression.1} parent=0 // pred_check_branch
    %33 = sbr.rel (0) target = $region33
  $region32: #{complex_linear_regression.1} parent=0 // pred_region
    _
  $region33: #{complex_linear_regression.1} parent=0 // pred_fallthru
    _
  // Predicated region
  $region34: #{complex_linear_regression.1} parent=0 // pred_check
    _
  $region35: #{complex_linear_regression.1} parent=0 // pred_check_branch
    %35 = sbr.rel (0) target = $region37
  $region36: #{complex_linear_regression.1} parent=0 // pred_region
    _
  $region37: #{complex_linear_regression.1} parent=0 // pred_fallthru
    _
  // Predicated region
  $region38: #{complex_linear_regression.1} parent=0 // pred_check
    _
  $region39: #{complex_linear_regression.1} parent=0 // pred_check_branch
    %37 = sbr.rel (0) target = $region41
  $region40: #{complex_linear_regression.1} parent=0 // pred_region
    _
  $region41: #{complex_linear_regression.1} parent=0 // pred_fallthru
    _
  // Predicated region
  $region42: #{complex_linear_regression.1} parent=0 // pred_check
    _
  $region43: #{complex_linear_regression.1} parent=0 // pred_check_branch
    %39 = sbr.rel (0) target = $region45
  $region44: #{complex_linear_regression.1} parent=0 // pred_region
    _
  $region45: #{complex_linear_regression.1} parent=0 // pred_fallthru
    _
  %v41 = vld [vmem:[%s0] sm:$0xf]
  %v42 = vld [vmem:[%s0 + $0x4] sm:$0xf]
  %v43 = vld [vmem:[%s0 + $0x8] sm:$0xf]
  %v44 = vld [vmem:[%s0 + $0xc] sm:$0xf]
  %v45 = vld [vmem:[%s0 + $0x10] sm:$0xf]
  %v46 = vld [vmem:[%s0 + $0x14] sm:$0xf]
  %v47 = vld [vmem:[%s0 + $0x18] sm:$0xf]
  %v48 = vld [vmem:[%s0 + $0x1c] sm:$0xf]
  %v49 = vld [vmem:[%s0 + $0x20] sm:$0xf]
  %v50 = vld [vmem:[%s0 + $0x24] sm:$0xf]
  %v51 = vld [vmem:[%s0 + $0x28] sm:$0xf]
  %v52 = vld [vmem:[%s0 + $0x2c] sm:$0xf]
  %v53 = vld [vmem:[%s0 + $0x30] sm:$0xf]
  %v54 = vld [vmem:[%s0 + $0x34] sm:$0xf]
  %v55 = vld [vmem:[%s0 + $0x38] sm:$0xf]
  %v56 = vld [vmem:[%s0 + $0x3c] sm:$0xf]
  %v57 = vld [vmem:[%s1] sm:$0xff]
  %v58 = vld [vmem:[%s1 + $0x8] sm:$0xff]
  %v59 = vld [vmem:[%s1 + $0x10] sm:$0xff]
  %v60 = vld [vmem:[%s1 + $0x18] sm:$0xff]
  %v61 = vld [vmem:[%s1 + $0x20] sm:$0xff]
  %v62 = vld [vmem:[%s1 + $0x28] sm:$0xff]
  %v63 = vld [vmem:[%s1 + $0x30] sm:$0xff]
  %v64 = vld [vmem:[%s1 + $0x38] sm:$0xff]
  %v65 = vld [vmem:[%s2] sm:$0xf]
  %v67 = vlaneseq
  %v68 = vshrl.u32 %v67, 7
  %v69 = vsub.s32 0, %v68
  %v70 = vrot.slane %v65, %v69
  %v71 = vlaneseq
  %v72 = vshrl.u32 %v71, 7
  %v73 = vsub.s32 1, %v72
  %v74 = vrot.slane %v65, %v73
  %v75 = vlaneseq
  %v76 = vshrl.u32 %v75, 7
  %v77 = vsub.s32 2, %v76
  %v78 = vrot.slane %v65, %v77
  %v79 = vlaneseq
  %v80 = vshrl.u32 %v79, 7
  %v81 = vsub.s32 3, %v80
  %v82 = vrot.slane %v65, %v81
  %v103 = vunpack.c.l.b16 %v41
  %v104 = vunpack.c.l.b16 %v42
  %v105 = vunpack.c.l.b16 %v43
  %v106 = vunpack.c.l.b16 %v44
  %v107 = vunpack.c.l.b16 %v45
  %v108 = vunpack.c.l.b16 %v46
  %v109 = vunpack.c.l.b16 %v47
  %v110 = vunpack.c.l.b16 %v48
  %v111 = vunpack.c.l.b16 %v49
  %v112 = vunpack.c.l.b16 %v50
  %v113 = vunpack.c.l.b16 %v51
  %v114 = vunpack.c.l.b16 %v52
  %v115 = vunpack.c.l.b16 %v53
  %v116 = vunpack.c.l.b16 %v54
  %v117 = vunpack.c.l.b16 %v55
  %v118 = vunpack.c.l.b16 %v56
  %v119 = vpack.c.b16 %v104, %v103
  %v120 = vpack.c.b16 %v106, %v105
  %v121 = vpack.c.b16 %v108, %v107
  %v122 = vpack.c.b16 %v110, %v109
  %v123 = vpack.c.b16 %v112, %v111
  %v124 = vpack.c.b16 %v114, %v113
  %v125 = vpack.c.b16 %v116, %v115
  %v126 = vpack.c.b16 %v118, %v117
  %v135 = vunpack.c.l.b16 %v57
  %v136 = vunpack.c.h.b16 %v57
  %v137 = vunpack.c.l.b16 %v58
  %v138 = vunpack.c.h.b16 %v58
  %v139 = vunpack.c.l.b16 %v59
  %v140 = vunpack.c.h.b16 %v59
  %v141 = vunpack.c.l.b16 %v60
  %v142 = vunpack.c.h.b16 %v60
  %v143 = vunpack.c.l.b16 %v61
  %v144 = vunpack.c.h.b16 %v61
  %v145 = vunpack.c.l.b16 %v62
  %v146 = vunpack.c.h.b16 %v62
  %v147 = vunpack.c.l.b16 %v63
  %v148 = vunpack.c.h.b16 %v63
  %v149 = vunpack.c.l.b16 %v64
  %v150 = vunpack.c.h.b16 %v64
  %v151 = vpack.c.b16 %v139, %v135
  %v152 = vpack.c.b16 %v140, %v136
  %v153 = vpack.c.b16 %v141, %v137
  %v154 = vpack.c.b16 %v142, %v138
  %v155 = vpack.c.b16 %v147, %v143
  %v156 = vpack.c.b16 %v148, %v144
  %v157 = vpack.c.b16 %v149, %v145
  %v158 = vpack.c.b16 %v150, %v146
  %vm167 = vcmask 261120
  %v169 = vsel %vm167, %v119, 0
  %v172 = vsel %vm167, %v120, 0
  %v175 = vsel %vm167, %v121, 0
  %v178 = vsel %vm167, %v122, 0
  %v181 = vsel %vm167, %v123, 0
  %v184 = vsel %vm167, %v124, 0
  %v187 = vsel %vm167, %v125, 0
  %v190 = vsel %vm167, %v126, 0
  %192 = vmatprep.subr.bf16.mxu0 %v152
  %193 = vmatpush1.bf16.msra.mxu0 %v151
  %194 = vmatprep.subr.bf16.mxu0 %v156
  %195 = vmatpush1.bf16.msra.mxu0 %v155
  %196 = vmatprep.subr.bf16.mxu0 0
  %197 = vmatpush1.bf16.msra.mxu0 0
  %198 = vmatprep.subr.bf16.mxu0 0
  %199 = vmatpush1.bf16.msra.mxu0 0
  %200 = vmatprep.subr.bf16.mxu0 0
  %201 = vmatpush1.bf16.msra.mxu0 0
  %202 = vmatprep.subr.bf16.mxu0 0
  %203 = vmatpush1.bf16.msra.mxu0 0
  %204 = vmatprep.subr.bf16.mxu0 0
  %205 = vmatpush1.bf16.msra.mxu0 0
  %206 = vmatprep.subr.bf16.mxu0 0
  %207 = vmatpush1.bf16.msra.mxu0 0
  %208 = vmatprep.subr.bf16.mxu0 0
  %209 = vmatpush1.bf16.msra.mxu0 0
  %210 = vmatprep.subr.bf16.mxu0 0
  %211 = vmatpush1.bf16.msra.mxu0 0
  %212 = vmatprep.subr.bf16.mxu0 0
  %213 = vmatpush1.bf16.msra.mxu0 0
  %214 = vmatprep.subr.bf16.mxu0 0
  %215 = vmatpush1.bf16.msra.mxu0 0
  %216 = vmatprep.subr.bf16.mxu0 0
  %217 = vmatpush1.bf16.msra.mxu0 0
  %218 = vmatprep.subr.bf16.mxu0 0
  %219 = vmatpush1.bf16.msra.mxu0 0
  %220 = vmatprep.subr.bf16.mxu0 0
  %221 = vmatpush1.bf16.msra.mxu0 0
  %222 = vmatprep.subr.bf16.mxu0 0
  %223 = vmatpush1.bf16.msra.mxu0 0
  %224 = vmatprep.mubr.bf16.mxu0 0
  %225 = vmatmul.mubr.bf16.gmra.mrb[0].mxu0 %v169
  %v226 = vpop.f32.mrb[0].mxu0
  %v227 = vadd.f32 %v70, %v226
  %v228 = vpop.f32.mrb[0].mxu0
  %v229 = vadd.f32 %v74, %v228
  %v230 = vpop.f32.mrb[0].mxu0
  %v231 = vadd.f32 %v70, %v230
  %v232 = vpop.f32.mrb[0].mxu0
  %v233 = vadd.f32 %v74, %v232
  %234 = vmatprep.mubr.bf16.mxu0 0
  %235 = vmatmul.mubr.bf16.gmra.mrb[0].mxu0 %v172
  %v236 = vpop.f32.mrb[0].mxu0
  %v237 = vadd.f32 %v70, %v236
  %v238 = vpop.f32.mrb[0].mxu0
  %v239 = vadd.f32 %v74, %v238
  %v240 = vpop.f32.mrb[0].mxu0
  %v241 = vadd.f32 %v70, %v240
  %v242 = vpop.f32.mrb[0].mxu0
  %v243 = vadd.f32 %v74, %v242
  %244 = vmatprep.mubr.bf16.mxu0 0
  %245 = vmatmul.mubr.bf16.gmra.mrb[0].mxu0 %v175
  %v246 = vpop.f32.mrb[0].mxu0
  %v247 = vadd.f32 %v70, %v246
  %v248 = vpop.f32.mrb[0].mxu0
  %v249 = vadd.f32 %v74, %v248
  %v250 = vpop.f32.mrb[0].mxu0
  %v251 = vadd.f32 %v70, %v250
  %v252 = vpop.f32.mrb[0].mxu0
  %v253 = vadd.f32 %v74, %v252
  %254 = vmatprep.mubr.bf16.mxu0 0
  %255 = vmatmul.mubr.bf16.gmra.mrb[0].mxu0 %v178
  %v256 = vpop.f32.mrb[0].mxu0
  %v257 = vadd.f32 %v70, %v256
  %v258 = vpop.f32.mrb[0].mxu0
  %v259 = vadd.f32 %v74, %v258
  %v260 = vpop.f32.mrb[0].mxu0
  %v261 = vadd.f32 %v70, %v260
  %v262 = vpop.f32.mrb[0].mxu0
  %v263 = vadd.f32 %v74, %v262
  %264 = vmatprep.mubr.bf16.mxu0 0
  %265 = vmatmul.mubr.bf16.gmra.mrb[0].mxu0 %v181
  %v266 = vpop.f32.mrb[0].mxu0
  %v267 = vadd.f32 %v70, %v266
  %v268 = vpop.f32.mrb[0].mxu0
  %v269 = vadd.f32 %v74, %v268
  %v270 = vpop.f32.mrb[0].mxu0
  %v271 = vadd.f32 %v70, %v270
  %v272 = vpop.f32.mrb[0].mxu0
  %v273 = vadd.f32 %v74, %v272
  %274 = vmatprep.mubr.bf16.mxu0 0
  %275 = vmatmul.mubr.bf16.gmra.mrb[0].mxu0 %v184
  %v276 = vpop.f32.mrb[0].mxu0
  %v277 = vadd.f32 %v70, %v276
  %v278 = vpop.f32.mrb[0].mxu0
  %v279 = vadd.f32 %v74, %v278
  %v280 = vpop.f32.mrb[0].mxu0
  %v281 = vadd.f32 %v70, %v280
  %v282 = vpop.f32.mrb[0].mxu0
  %v283 = vadd.f32 %v74, %v282
  %284 = vmatprep.mubr.bf16.mxu0 0
  %285 = vmatmul.mubr.bf16.gmra.mrb[0].mxu0 %v187
  %v286 = vpop.f32.mrb[0].mxu0
  %v287 = vadd.f32 %v70, %v286
  %v288 = vpop.f32.mrb[0].mxu0
  %v289 = vadd.f32 %v74, %v288
  %v290 = vpop.f32.mrb[0].mxu0
  %v291 = vadd.f32 %v70, %v290
  %v292 = vpop.f32.mrb[0].mxu0
  %v293 = vadd.f32 %v74, %v292
  %294 = vmatprep.mubr.bf16.mxu0 0
  %295 = vmatmul.mubr.bf16.gmra.mrb[0].mxu0 %v190
  %v296 = vpop.f32.mrb[0].mxu0
  %v297 = vadd.f32 %v70, %v296
  %v298 = vpop.f32.mrb[0].mxu0
  %v299 = vadd.f32 %v74, %v298
  %v300 = vpop.f32.mrb[0].mxu0
  %v301 = vadd.f32 %v70, %v300
  %v302 = vpop.f32.mrb[0].mxu0
  %v303 = vadd.f32 %v74, %v302
  %304 = vdwg.mxu0
  %305 = vmatprep.subr.bf16.mxu0 %v154
  %306 = vmatpush1.bf16.msra.mxu0 %v153
  %307 = vmatprep.subr.bf16.mxu0 %v158
  %308 = vmatpush1.bf16.msra.mxu0 %v157
  %309 = vmatprep.subr.bf16.mxu0 0
  %310 = vmatpush1.bf16.msra.mxu0 0
  %311 = vmatprep.subr.bf16.mxu0 0
  %312 = vmatpush1.bf16.msra.mxu0 0
  %313 = vmatprep.subr.bf16.mxu0 0
  %314 = vmatpush1.bf16.msra.mxu0 0
  %315 = vmatprep.subr.bf16.mxu0 0
  %316 = vmatpush1.bf16.msra.mxu0 0
  %317 = vmatprep.subr.bf16.mxu0 0
  %318 = vmatpush1.bf16.msra.mxu0 0
  %319 = vmatprep.subr.bf16.mxu0 0
  %320 = vmatpush1.bf16.msra.mxu0 0
  %321 = vmatprep.subr.bf16.mxu0 0
  %322 = vmatpush1.bf16.msra.mxu0 0
  %323 = vmatprep.subr.bf16.mxu0 0
  %324 = vmatpush1.bf16.msra.mxu0 0
  %325 = vmatprep.subr.bf16.mxu0 0
  %326 = vmatpush1.bf16.msra.mxu0 0
  %327 = vmatprep.subr.bf16.mxu0 0
  %328 = vmatpush1.bf16.msra.mxu0 0
  %329 = vmatprep.subr.bf16.mxu0 0
  %330 = vmatpush1.bf16.msra.mxu0 0
  %331 = vmatprep.subr.bf16.mxu0 0
  %332 = vmatpush1.bf16.msra.mxu0 0
  %333 = vmatprep.subr.bf16.mxu0 0
  %334 = vmatpush1.bf16.msra.mxu0 0
  %335 = vmatprep.subr.bf16.mxu0 0
  %336 = vmatpush1.bf16.msra.mxu0 0
  %337 = vmatprep.mubr.bf16.mxu0 0
  %338 = vmatmul.mubr.bf16.gmra.mrb[0].mxu0 %v169
  %v339 = vpop.f32.mrb[0].mxu0
  %v340 = vadd.f32 %v78, %v339
  %v341 = vpop.f32.mrb[0].mxu0
  %v342 = vadd.f32 %v82, %v341
  %v343 = vpop.f32.mrb[0].mxu0
  %v344 = vadd.f32 %v78, %v343
  %v345 = vpop.f32.mrb[0].mxu0
  %v346 = vadd.f32 %v82, %v345
  %347 = vmatprep.mubr.bf16.mxu0 0
  %348 = vmatmul.mubr.bf16.gmra.mrb[0].mxu0 %v172
  %v349 = vpop.f32.mrb[0].mxu0
  %v350 = vadd.f32 %v78, %v349
  %v351 = vpop.f32.mrb[0].mxu0
  %v352 = vadd.f32 %v82, %v351
  %v353 = vpop.f32.mrb[0].mxu0
  %v354 = vadd.f32 %v78, %v353
  %v355 = vpop.f32.mrb[0].mxu0
  %v356 = vadd.f32 %v82, %v355
  %357 = vmatprep.mubr.bf16.mxu0 0
  %358 = vmatmul.mubr.bf16.gmra.mrb[0].mxu0 %v175
  %v359 = vpop.f32.mrb[0].mxu0
  %v360 = vadd.f32 %v78, %v359
  %v361 = vpop.f32.mrb[0].mxu0
  %v362 = vadd.f32 %v82, %v361
  %v363 = vpop.f32.mrb[0].mxu0
  %v364 = vadd.f32 %v78, %v363
  %v365 = vpop.f32.mrb[0].mxu0
  %v366 = vadd.f32 %v82, %v365
  %367 = vmatprep.mubr.bf16.mxu0 0
  %368 = vmatmul.mubr.bf16.gmra.mrb[0].mxu0 %v178
  %v369 = vpop.f32.mrb[0].mxu0
  %v370 = vadd.f32 %v78, %v369
  %v371 = vpop.f32.mrb[0].mxu0
  %v372 = vadd.f32 %v82, %v371
  %v373 = vpop.f32.mrb[0].mxu0
  %v374 = vadd.f32 %v78, %v373
  %v375 = vpop.f32.mrb[0].mxu0
  %v376 = vadd.f32 %v82, %v375
  %377 = vmatprep.mubr.bf16.mxu0 0
  %378 = vmatmul.mubr.bf16.gmra.mrb[0].mxu0 %v181
  %v379 = vpop.f32.mrb[0].mxu0
  %v380 = vadd.f32 %v78, %v379
  %v381 = vpop.f32.mrb[0].mxu0
  %v382 = vadd.f32 %v82, %v381
  %v383 = vpop.f32.mrb[0].mxu0
  %v384 = vadd.f32 %v78, %v383
  %v385 = vpop.f32.mrb[0].mxu0
  %v386 = vadd.f32 %v82, %v385
  %387 = vmatprep.mubr.bf16.mxu0 0
  %388 = vmatmul.mubr.bf16.gmra.mrb[0].mxu0 %v184
  %v389 = vpop.f32.mrb[0].mxu0
  %v390 = vadd.f32 %v78, %v389
  %v391 = vpop.f32.mrb[0].mxu0
  %v392 = vadd.f32 %v82, %v391
  %v393 = vpop.f32.mrb[0].mxu0
  %v394 = vadd.f32 %v78, %v393
  %v395 = vpop.f32.mrb[0].mxu0
  %v396 = vadd.f32 %v82, %v395
  %397 = vmatprep.mubr.bf16.mxu0 0
  %398 = vmatmul.mubr.bf16.gmra.mrb[0].mxu0 %v187
  %v399 = vpop.f32.mrb[0].mxu0
  %v400 = vadd.f32 %v78, %v399
  %v401 = vpop.f32.mrb[0].mxu0
  %v402 = vadd.f32 %v82, %v401
  %v403 = vpop.f32.mrb[0].mxu0
  %v404 = vadd.f32 %v78, %v403
  %v405 = vpop.f32.mrb[0].mxu0
  %v406 = vadd.f32 %v82, %v405
  %407 = vmatprep.mubr.bf16.mxu0 0
  %408 = vmatmul.mubr.bf16.gmra.mrb[0].mxu0 %v190
  %v409 = vpop.f32.mrb[0].mxu0
  %v410 = vadd.f32 %v78, %v409
  %v411 = vpop.f32.mrb[0].mxu0
  %v412 = vadd.f32 %v82, %v411
  %v413 = vpop.f32.mrb[0].mxu0
  %v414 = vadd.f32 %v78, %v413
  %v415 = vpop.f32.mrb[0].mxu0
  %v416 = vadd.f32 %v82, %v415
  %417 = vdwg.mxu0
  %v418 = vmax.f32 %v227, 0.0
  %v419 = vmax.f32 %v229, 0.0
  %v420 = vmax.f32 %v340, 0.0
  %v421 = vmax.f32 %v342, 0.0
  %v422 = vmax.f32 %v231, 0.0
  %v423 = vmax.f32 %v233, 0.0
  %v424 = vmax.f32 %v344, 0.0
  %v425 = vmax.f32 %v346, 0.0
  %v426 = vmax.f32 %v237, 0.0
  %v427 = vmax.f32 %v239, 0.0
  %v428 = vmax.f32 %v350, 0.0
  %v429 = vmax.f32 %v352, 0.0
  %v430 = vmax.f32 %v241, 0.0
  %v431 = vmax.f32 %v243, 0.0
  %v432 = vmax.f32 %v354, 0.0
  %v433 = vmax.f32 %v356, 0.0
  %v434 = vmax.f32 %v247, 0.0
  %v435 = vmax.f32 %v249, 0.0
  %v436 = vmax.f32 %v360, 0.0
  %v437 = vmax.f32 %v362, 0.0
  %v438 = vmax.f32 %v251, 0.0
  %v439 = vmax.f32 %v253, 0.0
  %v440 = vmax.f32 %v364, 0.0
  %v441 = vmax.f32 %v366, 0.0
  %v442 = vmax.f32 %v257, 0.0
  %v443 = vmax.f32 %v259, 0.0
  %v444 = vmax.f32 %v370, 0.0
  %v445 = vmax.f32 %v372, 0.0
  %v446 = vmax.f32 %v261, 0.0
  %v447 = vmax.f32 %v263, 0.0
  %v448 = vmax.f32 %v374, 0.0
  %v449 = vmax.f32 %v376, 0.0
  %v450 = vmax.f32 %v267, 0.0
  %v451 = vmax.f32 %v269, 0.0
  %v452 = vmax.f32 %v380, 0.0
  %v453 = vmax.f32 %v382, 0.0
  %v454 = vmax.f32 %v271, 0.0
  %v455 = vmax.f32 %v273, 0.0
  %v456 = vmax.f32 %v384, 0.0
  %v457 = vmax.f32 %v386, 0.0
  %v458 = vmax.f32 %v277, 0.0
  %v459 = vmax.f32 %v279, 0.0
  %v460 = vmax.f32 %v390, 0.0
  %v461 = vmax.f32 %v392, 0.0
  %v462 = vmax.f32 %v281, 0.0
  %v463 = vmax.f32 %v283, 0.0
  %v464 = vmax.f32 %v394, 0.0
  %v465 = vmax.f32 %v396, 0.0
  %v466 = vmax.f32 %v287, 0.0
  %v467 = vmax.f32 %v289, 0.0
  %v468 = vmax.f32 %v400, 0.0
  %v469 = vmax.f32 %v402, 0.0
  %v470 = vmax.f32 %v291, 0.0
  %v471 = vmax.f32 %v293, 0.0
  %v472 = vmax.f32 %v404, 0.0
  %v473 = vmax.f32 %v406, 0.0
  %v474 = vmax.f32 %v297, 0.0
  %v475 = vmax.f32 %v299, 0.0
  %v476 = vmax.f32 %v410, 0.0
  %v477 = vmax.f32 %v412, 0.0
  %v478 = vmax.f32 %v301, 0.0
  %v479 = vmax.f32 %v303, 0.0
  %v480 = vmax.f32 %v414, 0.0
  %v481 = vmax.f32 %v416, 0.0
  %v482 = vpack.c.bf16 %v422, %v418
  %v483 = vpack.c.bf16 %v423, %v419
  %v484 = vpack.c.bf16 %v424, %v420
  %v485 = vpack.c.bf16 %v425, %v421
  %v486 = vpack.c.bf16 %v430, %v426
  %v487 = vpack.c.bf16 %v431, %v427
  %v488 = vpack.c.bf16 %v432, %v428
  %v489 = vpack.c.bf16 %v433, %v429
  %v490 = vpack.c.bf16 %v438, %v434
  %v491 = vpack.c.bf16 %v439, %v435
  %v492 = vpack.c.bf16 %v440, %v436
  %v493 = vpack.c.bf16 %v441, %v437
  %v494 = vpack.c.bf16 %v446, %v442
  %v495 = vpack.c.bf16 %v447, %v443
  %v496 = vpack.c.bf16 %v448, %v444
  %v497 = vpack.c.bf16 %v449, %v445
  %v498 = vpack.c.bf16 %v454, %v450
  %v499 = vpack.c.bf16 %v455, %v451
  %v500 = vpack.c.bf16 %v456, %v452
  %v501 = vpack.c.bf16 %v457, %v453
  %v502 = vpack.c.bf16 %v462, %v458
  %v503 = vpack.c.bf16 %v463, %v459
  %v504 = vpack.c.bf16 %v464, %v460
  %v505 = vpack.c.bf16 %v465, %v461
  %v506 = vpack.c.bf16 %v470, %v466
  %v507 = vpack.c.bf16 %v471, %v467
  %v508 = vpack.c.bf16 %v472, %v468
  %v509 = vpack.c.bf16 %v473, %v469
  %v510 = vpack.c.bf16 %v478, %v474
  %v511 = vpack.c.bf16 %v479, %v475
  %v512 = vpack.c.bf16 %v480, %v476
  %v513 = vpack.c.bf16 %v481, %v477
  %v514 = vld [vmem:[%s3] sm:$0xff]
  %v515 = vld [vmem:[%s3 + $0x8] sm:$0xff]
  %v516 = vld [vmem:[%s3 + $0x10] sm:$0xff]
  %v517 = vld [vmem:[%s3 + $0x18] sm:$0xff]
  %v518 = vld [vmem:[%s3 + $0x20] sm:$0xff]
  %v519 = vld [vmem:[%s3 + $0x28] sm:$0xff]
  %v520 = vld [vmem:[%s3 + $0x30] sm:$0xff]
  %v521 = vld [vmem:[%s3 + $0x38] sm:$0xff]
  %v522 = vld [vmem:[%s3 + $0x40] sm:$0xff]
  %v523 = vld [vmem:[%s3 + $0x48] sm:$0xff]
  %v524 = vld [vmem:[%s3 + $0x50] sm:$0xff]
  %v525 = vld [vmem:[%s3 + $0x58] sm:$0xff]
  %v526 = vld [vmem:[%s3 + $0x60] sm:$0xff]
  %v527 = vld [vmem:[%s3 + $0x68] sm:$0xff]
  %v528 = vld [vmem:[%s3 + $0x70] sm:$0xff]
  %v529 = vld [vmem:[%s3 + $0x78] sm:$0xff]
  %v530 = vld [vmem:[%s3 + $0x80] sm:$0xff]
  %v531 = vld [vmem:[%s3 + $0x88] sm:$0xff]
  %v532 = vld [vmem:[%s3 + $0x90] sm:$0xff]
  %v533 = vld [vmem:[%s3 + $0x98] sm:$0xff]
  %v534 = vld [vmem:[%s3 + $0xa0] sm:$0xff]
  %v535 = vld [vmem:[%s3 + $0xa8] sm:$0xff]
  %v536 = vld [vmem:[%s3 + $0xb0] sm:$0xff]
  %v537 = vld [vmem:[%s3 + $0xb8] sm:$0xff]
  %v538 = vld [vmem:[%s3 + $0xc0] sm:$0xff]
  %v539 = vld [vmem:[%s3 + $0xc8] sm:$0xff]
  %v540 = vld [vmem:[%s3 + $0xd0] sm:$0xff]
  %v541 = vld [vmem:[%s3 + $0xd8] sm:$0xff]
  %v542 = vld [vmem:[%s3 + $0xe0] sm:$0xff]
  %v543 = vld [vmem:[%s3 + $0xe8] sm:$0xff]
  %v544 = vld [vmem:[%s3 + $0xf0] sm:$0xff]
  %v545 = vld [vmem:[%s3 + $0xf8] sm:$0xff]
  %v546 = vld [vmem:[%s3 + $0x100] sm:$0xff]
  %v547 = vld [vmem:[%s3 + $0x108] sm:$0xff]
  %v548 = vld [vmem:[%s3 + $0x110] sm:$0xff]
  %v549 = vld [vmem:[%s3 + $0x118] sm:$0xff]
  %v550 = vld [vmem:[%s3 + $0x120] sm:$0xff]
  %v551 = vld [vmem:[%s3 + $0x128] sm:$0xff]
  %v552 = vld [vmem:[%s3 + $0x130] sm:$0xff]
  %v553 = vld [vmem:[%s3 + $0x138] sm:$0xff]
  %v554 = vld [vmem:[%s3 + $0x140] sm:$0xff]
  %v555 = vld [vmem:[%s3 + $0x148] sm:$0xff]
  %v556 = vld [vmem:[%s3 + $0x150] sm:$0xff]
  %v557 = vld [vmem:[%s3 + $0x158] sm:$0xff]
  %v558 = vld [vmem:[%s3 + $0x160] sm:$0xff]
  %v559 = vld [vmem:[%s3 + $0x168] sm:$0xff]
  %v560 = vld [vmem:[%s3 + $0x170] sm:$0xff]
  %v561 = vld [vmem:[%s3 + $0x178] sm:$0xff]
  %v562 = vld [vmem:[%s3 + $0x180] sm:$0xff]
  %v563 = vld [vmem:[%s3 + $0x188] sm:$0xff]
  %v564 = vld [vmem:[%s3 + $0x190] sm:$0xff]
  %v565 = vld [vmem:[%s3 + $0x198] sm:$0xff]
  %v566 = vld [vmem:[%s3 + $0x1a0] sm:$0xff]
  %v567 = vld [vmem:[%s3 + $0x1a8] sm:$0xff]
  %v568 = vld [vmem:[%s3 + $0x1b0] sm:$0xff]
  %v569 = vld [vmem:[%s3 + $0x1b8] sm:$0xff]
  %v570 = vld [vmem:[%s3 + $0x1c0] sm:$0xff]
  %v571 = vld [vmem:[%s3 + $0x1c8] sm:$0xff]
  %v572 = vld [vmem:[%s3 + $0x1d0] sm:$0xff]
  %v573 = vld [vmem:[%s3 + $0x1d8] sm:$0xff]
  %v574 = vld [vmem:[%s3 + $0x1e0] sm:$0xff]
  %v575 = vld [vmem:[%s3 + $0x1e8] sm:$0xff]
  %v576 = vld [vmem:[%s3 + $0x1f0] sm:$0xff]
  %v577 = vld [vmem:[%s3 + $0x1f8] sm:$0xff]
  %v578 = vld [vmem:[%s4] sm:$0x3]
  %v580 = vlaneseq
  %v581 = vshrl.u32 %v580, 7
  %v582 = vsub.s32 0, %v581
  %v583 = vrot.slane %v578, %v582
  %v584 = vlaneseq
  %v585 = vshrl.u32 %v584, 7
  %v586 = vsub.s32 1, %v585
  %v587 = vrot.slane %v578, %v586
  %v654 = vunpack.c.l.b16 %v514
  %v655 = vunpack.c.h.b16 %v514
  %v656 = vunpack.c.l.b16 %v515
  %v657 = vunpack.c.h.b16 %v515
  %v658 = vunpack.c.l.b16 %v516
  %v659 = vunpack.c.h.b16 %v516
  %v660 = vunpack.c.l.b16 %v517
  %v661 = vunpack.c.h.b16 %v517
  %v662 = vunpack.c.l.b16 %v518
  %v663 = vunpack.c.h.b16 %v518
  %v664 = vunpack.c.l.b16 %v519
  %v665 = vunpack.c.h.b16 %v519
  %v666 = vunpack.c.l.b16 %v520
  %v667 = vunpack.c.h.b16 %v520
  %v668 = vunpack.c.l.b16 %v521
  %v669 = vunpack.c.h.b16 %v521
  %v670 = vunpack.c.l.b16 %v522
  %v671 = vunpack.c.h.b16 %v522
  %v672 = vunpack.c.l.b16 %v523
  %v673 = vunpack.c.h.b16 %v523
  %v674 = vunpack.c.l.b16 %v524
  %v675 = vunpack.c.h.b16 %v524
  %v676 = vunpack.c.l.b16 %v525
  %v677 = vunpack.c.h.b16 %v525
  %v678 = vunpack.c.l.b16 %v526
  %v679 = vunpack.c.h.b16 %v526
  %v680 = vunpack.c.l.b16 %v527
  %v681 = vunpack.c.h.b16 %v527
  %v682 = vunpack.c.l.b16 %v528
  %v683 = vunpack.c.h.b16 %v528
  %v684 = vunpack.c.l.b16 %v529
  %v685 = vunpack.c.h.b16 %v529
  %v686 = vunpack.c.l.b16 %v530
  %v687 = vunpack.c.h.b16 %v530
  %v688 = vunpack.c.l.b16 %v531
  %v689 = vunpack.c.h.b16 %v531
  %v690 = vunpack.c.l.b16 %v532
  %v691 = vunpack.c.h.b16 %v532
  %v692 = vunpack.c.l.b16 %v533
  %v693 = vunpack.c.h.b16 %v533
  %v694 = vunpack.c.l.b16 %v534
  %v695 = vunpack.c.h.b16 %v534
  %v696 = vunpack.c.l.b16 %v535
  %v697 = vunpack.c.h.b16 %v535
  %v698 = vunpack.c.l.b16 %v536
  %v699 = vunpack.c.h.b16 %v536
  %v700 = vunpack.c.l.b16 %v537
  %v701 = vunpack.c.h.b16 %v537
  %v702 = vunpack.c.l.b16 %v538
  %v703 = vunpack.c.h.b16 %v538
  %v704 = vunpack.c.l.b16 %v539
  %v705 = vunpack.c.h.b16 %v539
  %v706 = vunpack.c.l.b16 %v540
  %v707 = vunpack.c.h.b16 %v540
  %v708 = vunpack.c.l.b16 %v541
  %v709 = vunpack.c.h.b16 %v541
  %v710 = vunpack.c.l.b16 %v542
  %v711 = vunpack.c.h.b16 %v542
  %v712 = vunpack.c.l.b16 %v543
  %v713 = vunpack.c.h.b16 %v543
  %v714 = vunpack.c.l.b16 %v544
  %v715 = vunpack.c.h.b16 %v544
  %v716 = vunpack.c.l.b16 %v545
  %v717 = vunpack.c.h.b16 %v545
  %v718 = vunpack.c.l.b16 %v546
  %v719 = vunpack.c.h.b16 %v546
  %v720 = vunpack.c.l.b16 %v547
  %v721 = vunpack.c.h.b16 %v547
  %v722 = vunpack.c.l.b16 %v548
  %v723 = vunpack.c.h.b16 %v548
  %v724 = vunpack.c.l.b16 %v549
  %v725 = vunpack.c.h.b16 %v549
  %v726 = vunpack.c.l.b16 %v550
  %v727 = vunpack.c.h.b16 %v550
  %v728 = vunpack.c.l.b16 %v551
  %v729 = vunpack.c.h.b16 %v551
  %v730 = vunpack.c.l.b16 %v552
  %v731 = vunpack.c.h.b16 %v552
  %v732 = vunpack.c.l.b16 %v553
  %v733 = vunpack.c.h.b16 %v553
  %v734 = vunpack.c.l.b16 %v554
  %v735 = vunpack.c.h.b16 %v554
  %v736 = vunpack.c.l.b16 %v555
  %v737 = vunpack.c.h.b16 %v555
  %v738 = vunpack.c.l.b16 %v556
  %v739 = vunpack.c.h.b16 %v556
  %v740 = vunpack.c.l.b16 %v557
  %v741 = vunpack.c.h.b16 %v557
  %v742 = vunpack.c.l.b16 %v558
  %v743 = vunpack.c.h.b16 %v558
  %v744 = vunpack.c.l.b16 %v559
  %v745 = vunpack.c.h.b16 %v559
  %v746 = vunpack.c.l.b16 %v560
  %v747 = vunpack.c.h.b16 %v560
  %v748 = vunpack.c.l.b16 %v561
  %v749 = vunpack.c.h.b16 %v561
  %v750 = vunpack.c.l.b16 %v562
  %v751 = vunpack.c.h.b16 %v562
  %v752 = vunpack.c.l.b16 %v563
  %v753 = vunpack.c.h.b16 %v563
  %v754 = vunpack.c.l.b16 %v564
  %v755 = vunpack.c.h.b16 %v564
  %v756 = vunpack.c.l.b16 %v565
  %v757 = vunpack.c.h.b16 %v565
  %v758 = vunpack.c.l.b16 %v566
  %v759 = vunpack.c.h.b16 %v566
  %v760 = vunpack.c.l.b16 %v567
  %v761 = vunpack.c.h.b16 %v567
  %v762 = vunpack.c.l.b16 %v568
  %v763 = vunpack.c.h.b16 %v568
  %v764 = vunpack.c.l.b16 %v569
  %v765 = vunpack.c.h.b16 %v569
  %v766 = vunpack.c.l.b16 %v570
  %v767 = vunpack.c.h.b16 %v570
  %v768 = vunpack.c.l.b16 %v571
  %v769 = vunpack.c.h.b16 %v571
  %v770 = vunpack.c.l.b16 %v572
  %v771 = vunpack.c.h.b16 %v572
  %v772 = vunpack.c.l.b16 %v573
  %v773 = vunpack.c.h.b16 %v573
  %v774 = vunpack.c.l.b16 %v574
  %v775 = vunpack.c.h.b16 %v574
  %v776 = vunpack.c.l.b16 %v575
  %v777 = vunpack.c.h.b16 %v575
  %v778 = vunpack.c.l.b16 %v576
  %v779 = vunpack.c.h.b16 %v576
  %v780 = vunpack.c.l.b16 %v577
  %v781 = vunpack.c.h.b16 %v577
  %v782 = vpack.c.b16 %v656, %v654
  %v783 = vpack.c.b16 %v657, %v655
  %v784 = vpack.c.b16 %v660, %v658
  %v785 = vpack.c.b16 %v661, %v659
  %v786 = vpack.c.b16 %v664, %v662
  %v787 = vpack.c.b16 %v665, %v663
  %v788 = vpack.c.b16 %v668, %v666
  %v789 = vpack.c.b16 %v669, %v667
  %v790 = vpack.c.b16 %v672, %v670
  %v791 = vpack.c.b16 %v673, %v671
  %v792 = vpack.c.b16 %v676, %v674
  %v793 = vpack.c.b16 %v677, %v675
  %v794 = vpack.c.b16 %v680, %v678
  %v795 = vpack.c.b16 %v681, %v679
  %v796 = vpack.c.b16 %v684, %v682
  %v797 = vpack.c.b16 %v685, %v683
  %v798 = vpack.c.b16 %v688, %v686
  %v799 = vpack.c.b16 %v689, %v687
  %v800 = vpack.c.b16 %v692, %v690
  %v801 = vpack.c.b16 %v693, %v691
  %v802 = vpack.c.b16 %v696, %v694
  %v803 = vpack.c.b16 %v697, %v695
  %v804 = vpack.c.b16 %v700, %v698
  %v805 = vpack.c.b16 %v701, %v699
  %v806 = vpack.c.b16 %v704, %v702
  %v807 = vpack.c.b16 %v705, %v703
  %v808 = vpack.c.b16 %v708, %v706
  %v809 = vpack.c.b16 %v709, %v707
  %v810 = vpack.c.b16 %v712, %v710
  %v811 = vpack.c.b16 %v713, %v711
  %v812 = vpack.c.b16 %v716, %v714
  %v813 = vpack.c.b16 %v717, %v715
  %v814 = vpack.c.b16 %v720, %v718
  %v815 = vpack.c.b16 %v721, %v719
  %v816 = vpack.c.b16 %v724, %v722
  %v817 = vpack.c.b16 %v725, %v723
  %v818 = vpack.c.b16 %v728, %v726
  %v819 = vpack.c.b16 %v729, %v727
  %v820 = vpack.c.b16 %v732, %v730
  %v821 = vpack.c.b16 %v733, %v731
  %v822 = vpack.c.b16 %v736, %v734
  %v823 = vpack.c.b16 %v737, %v735
  %v824 = vpack.c.b16 %v740, %v738
  %v825 = vpack.c.b16 %v741, %v739
  %v826 = vpack.c.b16 %v744, %v742
  %v827 = vpack.c.b16 %v745, %v743
  %v828 = vpack.c.b16 %v748, %v746
  %v829 = vpack.c.b16 %v749, %v747
  %v830 = vpack.c.b16 %v752, %v750
  %v831 = vpack.c.b16 %v753, %v751
  %v832 = vpack.c.b16 %v756, %v754
  %v833 = vpack.c.b16 %v757, %v755
  %v834 = vpack.c.b16 %v760, %v758
  %v835 = vpack.c.b16 %v761, %v759
  %v836 = vpack.c.b16 %v764, %v762
  %v837 = vpack.c.b16 %v765, %v763
  %v838 = vpack.c.b16 %v768, %v766
  %v839 = vpack.c.b16 %v769, %v767
  %v840 = vpack.c.b16 %v772, %v770
  %v841 = vpack.c.b16 %v773, %v771
  %v842 = vpack.c.b16 %v776, %v774
  %v843 = vpack.c.b16 %v777, %v775
  %v844 = vpack.c.b16 %v780, %v778
  %v845 = vpack.c.b16 %v781, %v779
  %910 = vmatprep.subr.bf16.mxu0 %v783
  %911 = vmatpush1.bf16.msra.mxu0 %v782
  %912 = vmatprep.subr.bf16.mxu0 %v785
  %913 = vmatpush1.bf16.msra.mxu0 %v784
  %914 = vmatprep.subr.bf16.mxu0 %v787
  %915 = vmatpush1.bf16.msra.mxu0 %v786
  %916 = vmatprep.subr.bf16.mxu0 %v789
  %917 = vmatpush1.bf16.msra.mxu0 %v788
  %918 = vmatprep.subr.bf16.mxu0 %v791
  %919 = vmatpush1.bf16.msra.mxu0 %v790
  %920 = vmatprep.subr.bf16.mxu0 %v793
  %921 = vmatpush1.bf16.msra.mxu0 %v792
  %922 = vmatprep.subr.bf16.mxu0 %v795
  %923 = vmatpush1.bf16.msra.mxu0 %v794
  %924 = vmatprep.subr.bf16.mxu0 %v797
  %925 = vmatpush1.bf16.msra.mxu0 %v796
  %926 = vmatprep.subr.bf16.mxu0 %v799
  %927 = vmatpush1.bf16.msra.mxu0 %v798
  %928 = vmatprep.subr.bf16.mxu0 %v801
  %929 = vmatpush1.bf16.msra.mxu0 %v800
  %930 = vmatprep.subr.bf16.mxu0 %v803
  %931 = vmatpush1.bf16.msra.mxu0 %v802
  %932 = vmatprep.subr.bf16.mxu0 %v805
  %933 = vmatpush1.bf16.msra.mxu0 %v804
  %934 = vmatprep.subr.bf16.mxu0 %v807
  %935 = vmatpush1.bf16.msra.mxu0 %v806
  %936 = vmatprep.subr.bf16.mxu0 %v809
  %937 = vmatpush1.bf16.msra.mxu0 %v808
  %938 = vmatprep.subr.bf16.mxu0 %v811
  %939 = vmatpush1.bf16.msra.mxu0 %v810
  %940 = vmatprep.subr.bf16.mxu0 %v813
  %941 = vmatpush1.bf16.msra.mxu0 %v812
  %942 = vmatprep.mubr.bf16.mxu0 %v483
  %943 = vmatmul.mubr.bf16.gmra.mrb[0].mxu0 %v482
  %v944 = vpop.f32.mrb[0].mxu0
  %v945 = vadd.f32 %v583, %v944
  %v946 = vpop.f32.mrb[0].mxu0
  %v947 = vadd.f32 %v587, %v946
  %v948 = vpop.f32.mrb[0].mxu0
  %v949 = vadd.f32 %v583, %v948
  %v950 = vpop.f32.mrb[0].mxu0
  %v951 = vadd.f32 %v587, %v950
  %952 = vmatprep.mubr.bf16.mxu0 %v487
  %953 = vmatmul.mubr.bf16.gmra.mrb[0].mxu0 %v486
  %v954 = vpop.f32.mrb[0].mxu0
  %v955 = vadd.f32 %v583, %v954
  %v956 = vpop.f32.mrb[0].mxu0
  %v957 = vadd.f32 %v587, %v956
  %v958 = vpop.f32.mrb[0].mxu0
  %v959 = vadd.f32 %v583, %v958
  %v960 = vpop.f32.mrb[0].mxu0
  %v961 = vadd.f32 %v587, %v960
  %962 = vmatprep.mubr.bf16.mxu0 %v491
  %963 = vmatmul.mubr.bf16.gmra.mrb[0].mxu0 %v490
  %v964 = vpop.f32.mrb[0].mxu0
  %v965 = vadd.f32 %v583, %v964
  %v966 = vpop.f32.mrb[0].mxu0
  %v967 = vadd.f32 %v587, %v966
  %v968 = vpop.f32.mrb[0].mxu0
  %v969 = vadd.f32 %v583, %v968
  %v970 = vpop.f32.mrb[0].mxu0
  %v971 = vadd.f32 %v587, %v970
  %972 = vmatprep.mubr.bf16.mxu0 %v495
  %973 = vmatmul.mubr.bf16.gmra.mrb[0].mxu0 %v494
  %v974 = vpop.f32.mrb[0].mxu0
  %v975 = vadd.f32 %v583, %v974
  %v976 = vpop.f32.mrb[0].mxu0
  %v977 = vadd.f32 %v587, %v976
  %v978 = vpop.f32.mrb[0].mxu0
  %v979 = vadd.f32 %v583, %v978
  %v980 = vpop.f32.mrb[0].mxu0
  %v981 = vadd.f32 %v587, %v980
  %982 = vmatprep.mubr.bf16.mxu0 %v499
  %983 = vmatmul.mubr.bf16.gmra.mrb[0].mxu0 %v498
  %v984 = vpop.f32.mrb[0].mxu0
  %v985 = vadd.f32 %v583, %v984
  %v986 = vpop.f32.mrb[0].mxu0
  %v987 = vadd.f32 %v587, %v986
  %v988 = vpop.f32.mrb[0].mxu0
  %v989 = vadd.f32 %v583, %v988
  %v990 = vpop.f32.mrb[0].mxu0
  %v991 = vadd.f32 %v587, %v990
  %992 = vmatprep.mubr.bf16.mxu0 %v503
  %993 = vmatmul.mubr.bf16.gmra.mrb[0].mxu0 %v502
  %v994 = vpop.f32.mrb[0].mxu0
  %v995 = vadd.f32 %v583, %v994
  %v996 = vpop.f32.mrb[0].mxu0
  %v997 = vadd.f32 %v587, %v996
  %v998 = vpop.f32.mrb[0].mxu0
  %v999 = vadd.f32 %v583, %v998
  %v1000 = vpop.f32.mrb[0].mxu0
  %v1001 = vadd.f32 %v587, %v1000
  %1002 = vmatprep.mubr.bf16.mxu0 %v507
  %1003 = vmatmul.mubr.bf16.gmra.mrb[0].mxu0 %v506
  %v1004 = vpop.f32.mrb[0].mxu0
  %v1005 = vadd.f32 %v583, %v1004
  %v1006 = vpop.f32.mrb[0].mxu0
  %v1007 = vadd.f32 %v587, %v1006
  %v1008 = vpop.f32.mrb[0].mxu0
  %v1009 = vadd.f32 %v583, %v1008
  %v1010 = vpop.f32.mrb[0].mxu0
  %v1011 = vadd.f32 %v587, %v1010
  %1012 = vmatprep.mubr.bf16.mxu0 %v511
  %1013 = vmatmul.mubr.bf16.gmra.mrb[0].mxu0 %v510
  %v1014 = vpop.f32.mrb[0].mxu0
  %v1015 = vadd.f32 %v583, %v1014
  %v1016 = vpop.f32.mrb[0].mxu0
  %v1017 = vadd.f32 %v587, %v1016
  %v1018 = vpop.f32.mrb[0].mxu0
  %v1019 = vadd.f32 %v583, %v1018
  %v1020 = vpop.f32.mrb[0].mxu0
  %v1021 = vadd.f32 %v587, %v1020
  %1022 = vdwg.mxu0
  %1023 = vmatprep.subr.bf16.mxu0 %v815
  %1024 = vmatpush1.bf16.msra.mxu0 %v814
  %1025 = vmatprep.subr.bf16.mxu0 %v817
  %1026 = vmatpush1.bf16.msra.mxu0 %v816
  %1027 = vmatprep.subr.bf16.mxu0 %v819
  %1028 = vmatpush1.bf16.msra.mxu0 %v818
  %1029 = vmatprep.subr.bf16.mxu0 %v821
  %1030 = vmatpush1.bf16.msra.mxu0 %v820
  %1031 = vmatprep.subr.bf16.mxu0 %v823
  %1032 = vmatpush1.bf16.msra.mxu0 %v822
  %1033 = vmatprep.subr.bf16.mxu0 %v825
  %1034 = vmatpush1.bf16.msra.mxu0 %v824
  %1035 = vmatprep.subr.bf16.mxu0 %v827
  %1036 = vmatpush1.bf16.msra.mxu0 %v826
  %1037 = vmatprep.subr.bf16.mxu0 %v829
  %1038 = vmatpush1.bf16.msra.mxu0 %v828
  %1039 = vmatprep.subr.bf16.mxu0 %v831
  %1040 = vmatpush1.bf16.msra.mxu0 %v830
  %1041 = vmatprep.subr.bf16.mxu0 %v833
  %1042 = vmatpush1.bf16.msra.mxu0 %v832
  %1043 = vmatprep.subr.bf16.mxu0 %v835
  %1044 = vmatpush1.bf16.msra.mxu0 %v834
  %1045 = vmatprep.subr.bf16.mxu0 %v837
  %1046 = vmatpush1.bf16.msra.mxu0 %v836
  %1047 = vmatprep.subr.bf16.mxu0 %v839
  %1048 = vmatpush1.bf16.msra.mxu0 %v838
  %1049 = vmatprep.subr.bf16.mxu0 %v841
  %1050 = vmatpush1.bf16.msra.mxu0 %v840
  %1051 = vmatprep.subr.bf16.mxu0 %v843
  %1052 = vmatpush1.bf16.msra.mxu0 %v842
  %1053 = vmatprep.subr.bf16.mxu0 %v845
  %1054 = vmatpush1.bf16.msra.mxu0 %v844
  %1055 = vmatprep.mubr.bf16.mxu0 %v485
  %1056 = vmatmul.mubr.bf16.gmra.mrb[0].mxu0 %v484
  %v1057 = vpop.f32.mrb[0].mxu0
  %v1058 = vadd.f32 %v945, %v1057
  %v1059 = vpop.f32.mrb[0].mxu0
  %v1060 = vadd.f32 %v947, %v1059
  %v1061 = vpop.f32.mrb[0].mxu0
  %v1062 = vadd.f32 %v949, %v1061
  %v1063 = vpop.f32.mrb[0].mxu0
  %v1064 = vadd.f32 %v951, %v1063
  %1065 = vmatprep.mubr.bf16.mxu0 %v489
  %1066 = vmatmul.mubr.bf16.gmra.mrb[0].mxu0 %v488
  %v1067 = vpop.f32.mrb[0].mxu0
  %v1068 = vadd.f32 %v955, %v1067
  %v1069 = vpop.f32.mrb[0].mxu0
  %v1070 = vadd.f32 %v957, %v1069
  %v1071 = vpop.f32.mrb[0].mxu0
  %v1072 = vadd.f32 %v959, %v1071
  %v1073 = vpop.f32.mrb[0].mxu0
  %v1074 = vadd.f32 %v961, %v1073
  %1075 = vmatprep.mubr.bf16.mxu0 %v493
  %1076 = vmatmul.mubr.bf16.gmra.mrb[0].mxu0 %v492
  %v1077 = vpop.f32.mrb[0].mxu0
  %v1078 = vadd.f32 %v965, %v1077
  %v1079 = vpop.f32.mrb[0].mxu0
  %v1080 = vadd.f32 %v967, %v1079
  %v1081 = vpop.f32.mrb[0].mxu0
  %v1082 = vadd.f32 %v969, %v1081
  %v1083 = vpop.f32.mrb[0].mxu0
  %v1084 = vadd.f32 %v971, %v1083
  %1085 = vmatprep.mubr.bf16.mxu0 %v497
  %1086 = vmatmul.mubr.bf16.gmra.mrb[0].mxu0 %v496
  %v1087 = vpop.f32.mrb[0].mxu0
  %v1088 = vadd.f32 %v975, %v1087
  %v1089 = vpop.f32.mrb[0].mxu0
  %v1090 = vadd.f32 %v977, %v1089
  %v1091 = vpop.f32.mrb[0].mxu0
  %v1092 = vadd.f32 %v979, %v1091
  %v1093 = vpop.f32.mrb[0].mxu0
  %v1094 = vadd.f32 %v981, %v1093
  %1095 = vmatprep.mubr.bf16.mxu0 %v501
  %1096 = vmatmul.mubr.bf16.gmra.mrb[0].mxu0 %v500
  %v1097 = vpop.f32.mrb[0].mxu0
  %v1098 = vadd.f32 %v985, %v1097
  %v1099 = vpop.f32.mrb[0].mxu0
  %v1100 = vadd.f32 %v987, %v1099
  %v1101 = vpop.f32.mrb[0].mxu0
  %v1102 = vadd.f32 %v989, %v1101
  %v1103 = vpop.f32.mrb[0].mxu0
  %v1104 = vadd.f32 %v991, %v1103
  %1105 = vmatprep.mubr.bf16.mxu0 %v505
  %1106 = vmatmul.mubr.bf16.gmra.mrb[0].mxu0 %v504
  %v1107 = vpop.f32.mrb[0].mxu0
  %v1108 = vadd.f32 %v995, %v1107
  %v1109 = vpop.f32.mrb[0].mxu0
  %v1110 = vadd.f32 %v997, %v1109
  %v1111 = vpop.f32.mrb[0].mxu0
  %v1112 = vadd.f32 %v999, %v1111
  %v1113 = vpop.f32.mrb[0].mxu0
  %v1114 = vadd.f32 %v1001, %v1113
  %1115 = vmatprep.mubr.bf16.mxu0 %v509
  %1116 = vmatmul.mubr.bf16.gmra.mrb[0].mxu0 %v508
  %v1117 = vpop.f32.mrb[0].mxu0
  %v1118 = vadd.f32 %v1005, %v1117
  %v1119 = vpop.f32.mrb[0].mxu0
  %v1120 = vadd.f32 %v1007, %v1119
  %v1121 = vpop.f32.mrb[0].mxu0
  %v1122 = vadd.f32 %v1009, %v1121
  %v1123 = vpop.f32.mrb[0].mxu0
  %v1124 = vadd.f32 %v1011, %v1123
  %1125 = vmatprep.mubr.bf16.mxu0 %v513
  %1126 = vmatmul.mubr.bf16.gmra.mrb[0].mxu0 %v512
  %v1127 = vpop.f32.mrb[0].mxu0
  %v1128 = vadd.f32 %v1015, %v1127
  %v1129 = vpop.f32.mrb[0].mxu0
  %v1130 = vadd.f32 %v1017, %v1129
  %v1131 = vpop.f32.mrb[0].mxu0
  %v1132 = vadd.f32 %v1019, %v1131
  %v1133 = vpop.f32.mrb[0].mxu0
  %v1134 = vadd.f32 %v1021, %v1133
  %1135 = vdwg.mxu0
  %v1136 = vmax.f32 %v1058, 0.0
  %v1137 = vmax.f32 %v1060, 0.0
  %v1138 = vmax.f32 %v1062, 0.0
  %v1139 = vmax.f32 %v1064, 0.0
  %v1140 = vmax.f32 %v1068, 0.0
  %v1141 = vmax.f32 %v1070, 0.0
  %v1142 = vmax.f32 %v1072, 0.0
  %v1143 = vmax.f32 %v1074, 0.0
  %v1144 = vmax.f32 %v1078, 0.0
  %v1145 = vmax.f32 %v1080, 0.0
  %v1146 = vmax.f32 %v1082, 0.0
  %v1147 = vmax.f32 %v1084, 0.0
  %v1148 = vmax.f32 %v1088, 0.0
  %v1149 = vmax.f32 %v1090, 0.0
  %v1150 = vmax.f32 %v1092, 0.0
  %v1151 = vmax.f32 %v1094, 0.0
  %v1152 = vmax.f32 %v1098, 0.0
  %v1153 = vmax.f32 %v1100, 0.0
  %v1154 = vmax.f32 %v1102, 0.0
  %v1155 = vmax.f32 %v1104, 0.0
  %v1156 = vmax.f32 %v1108, 0.0
  %v1157 = vmax.f32 %v1110, 0.0
  %v1158 = vmax.f32 %v1112, 0.0
  %v1159 = vmax.f32 %v1114, 0.0
  %v1160 = vmax.f32 %v1118, 0.0
  %v1161 = vmax.f32 %v1120, 0.0
  %v1162 = vmax.f32 %v1122, 0.0
  %v1163 = vmax.f32 %v1124, 0.0
  %v1164 = vmax.f32 %v1128, 0.0
  %v1165 = vmax.f32 %v1130, 0.0
  %v1166 = vmax.f32 %v1132, 0.0
  %v1167 = vmax.f32 %v1134, 0.0
  %v1168 = vpack.c.bf16 %v1138, %v1136
  %v1169 = vpack.c.bf16 %v1139, %v1137
  %v1170 = vpack.c.bf16 %v1142, %v1140
  %v1171 = vpack.c.bf16 %v1143, %v1141
  %v1172 = vpack.c.bf16 %v1146, %v1144
  %v1173 = vpack.c.bf16 %v1147, %v1145
  %v1174 = vpack.c.bf16 %v1150, %v1148
  %v1175 = vpack.c.bf16 %v1151, %v1149
  %v1176 = vpack.c.bf16 %v1154, %v1152
  %v1177 = vpack.c.bf16 %v1155, %v1153
  %v1178 = vpack.c.bf16 %v1158, %v1156
  %v1179 = vpack.c.bf16 %v1159, %v1157
  %v1180 = vpack.c.bf16 %v1162, %v1160
  %v1181 = vpack.c.bf16 %v1163, %v1161
  %v1182 = vpack.c.bf16 %v1166, %v1164
  %v1183 = vpack.c.bf16 %v1167, %v1165
  %v1184 = vld [vmem:[%s5] sm:$0xf]
  %v1185 = vld [vmem:[%s5 + $0x4] sm:$0xf]
  %v1186 = vld [vmem:[%s5 + $0x8] sm:$0xf]
  %v1187 = vld [vmem:[%s5 + $0xc] sm:$0xf]
  %v1188 = vld [vmem:[%s5 + $0x10] sm:$0xf]
  %v1189 = vld [vmem:[%s5 + $0x14] sm:$0xf]
  %v1190 = vld [vmem:[%s5 + $0x18] sm:$0xf]
  %v1191 = vld [vmem:[%s5 + $0x1c] sm:$0xf]
  %v1192 = vld [vmem:[%s5 + $0x20] sm:$0xf]
  %v1193 = vld [vmem:[%s5 + $0x24] sm:$0xf]
  %v1194 = vld [vmem:[%s5 + $0x28] sm:$0xf]
  %v1195 = vld [vmem:[%s5 + $0x2c] sm:$0xf]
  %v1196 = vld [vmem:[%s5 + $0x30] sm:$0xf]
  %v1197 = vld [vmem:[%s5 + $0x34] sm:$0xf]
  %v1198 = vld [vmem:[%s5 + $0x38] sm:$0xf]
  %v1199 = vld [vmem:[%s5 + $0x3c] sm:$0xf]
  %v1200 = vld [vmem:[%s5 + $0x40] sm:$0xf]
  %v1201 = vld [vmem:[%s5 + $0x44] sm:$0xf]
  %v1202 = vld [vmem:[%s5 + $0x48] sm:$0xf]
  %v1203 = vld [vmem:[%s5 + $0x4c] sm:$0xf]
  %v1204 = vld [vmem:[%s5 + $0x50] sm:$0xf]
  %v1205 = vld [vmem:[%s5 + $0x54] sm:$0xf]
  %v1206 = vld [vmem:[%s5 + $0x58] sm:$0xf]
  %v1207 = vld [vmem:[%s5 + $0x5c] sm:$0xf]
  %v1208 = vld [vmem:[%s5 + $0x60] sm:$0xf]
  %v1209 = vld [vmem:[%s5 + $0x64] sm:$0xf]
  %v1210 = vld [vmem:[%s5 + $0x68] sm:$0xf]
  %v1211 = vld [vmem:[%s5 + $0x6c] sm:$0xf]
  %v1212 = vld [vmem:[%s5 + $0x70] sm:$0xf]
  %v1213 = vld [vmem:[%s5 + $0x74] sm:$0xf]
  %v1214 = vld [vmem:[%s5 + $0x78] sm:$0xf]
  %v1215 = vld [vmem:[%s5 + $0x7c] sm:$0xf]
  %v1216 = vld [vmem:[%s6] sm:$0x1]
  %v1218 = vlaneseq
  %v1219 = vshrl.u32 %v1218, 7
  %v1220 = vsub.s32 0, %v1219
  %v1221 = vrot.slane %v1216, %v1220
  %v1255 = vunpack.c.l.b16 %v1184
  %v1256 = vunpack.c.l.b16 %v1185
  %v1257 = vunpack.c.l.b16 %v1186
  %v1258 = vunpack.c.l.b16 %v1187
  %v1259 = vunpack.c.l.b16 %v1188
  %v1260 = vunpack.c.l.b16 %v1189
  %v1261 = vunpack.c.l.b16 %v1190
  %v1262 = vunpack.c.l.b16 %v1191
  %v1263 = vunpack.c.l.b16 %v1192
  %v1264 = vunpack.c.l.b16 %v1193
  %v1265 = vunpack.c.l.b16 %v1194
  %v1266 = vunpack.c.l.b16 %v1195
  %v1267 = vunpack.c.l.b16 %v1196
  %v1268 = vunpack.c.l.b16 %v1197
  %v1269 = vunpack.c.l.b16 %v1198
  %v1270 = vunpack.c.l.b16 %v1199
  %v1271 = vunpack.c.l.b16 %v1200
  %v1272 = vunpack.c.l.b16 %v1201
  %v1273 = vunpack.c.l.b16 %v1202
  %v1274 = vunpack.c.l.b16 %v1203
  %v1275 = vunpack.c.l.b16 %v1204
  %v1276 = vunpack.c.l.b16 %v1205
  %v1277 = vunpack.c.l.b16 %v1206
  %v1278 = vunpack.c.l.b16 %v1207
  %v1279 = vunpack.c.l.b16 %v1208
  %v1280 = vunpack.c.l.b16 %v1209
  %v1281 = vunpack.c.l.b16 %v1210
  %v1282 = vunpack.c.l.b16 %v1211
  %v1283 = vunpack.c.l.b16 %v1212
  %v1284 = vunpack.c.l.b16 %v1213
  %v1285 = vunpack.c.l.b16 %v1214
  %v1286 = vunpack.c.l.b16 %v1215
  %v1287 = vpack.c.b16 %v1256, %v1255
  %v1288 = vpack.c.b16 %v1258, %v1257
  %v1289 = vpack.c.b16 %v1260, %v1259
  %v1290 = vpack.c.b16 %v1262, %v1261
  %v1291 = vpack.c.b16 %v1264, %v1263
  %v1292 = vpack.c.b16 %v1266, %v1265
  %v1293 = vpack.c.b16 %v1268, %v1267
  %v1294 = vpack.c.b16 %v1270, %v1269
  %v1295 = vpack.c.b16 %v1272, %v1271
  %v1296 = vpack.c.b16 %v1274, %v1273
  %v1297 = vpack.c.b16 %v1276, %v1275
  %v1298 = vpack.c.b16 %v1278, %v1277
  %v1299 = vpack.c.b16 %v1280, %v1279
  %v1300 = vpack.c.b16 %v1282, %v1281
  %v1301 = vpack.c.b16 %v1284, %v1283
  %v1302 = vpack.c.b16 %v1286, %v1285
  %1319 = vmatprep.subr.bf16.mxu0 0
  %1320 = vmatpush1.bf16.msra.mxu0 %v1287
  %1321 = vmatprep.subr.bf16.mxu0 0
  %1322 = vmatpush1.bf16.msra.mxu0 %v1288
  %1323 = vmatprep.subr.bf16.mxu0 0
  %1324 = vmatpush1.bf16.msra.mxu0 %v1289
  %1325 = vmatprep.subr.bf16.mxu0 0
  %1326 = vmatpush1.bf16.msra.mxu0 %v1290
  %1327 = vmatprep.subr.bf16.mxu0 0
  %1328 = vmatpush1.bf16.msra.mxu0 %v1291
  %1329 = vmatprep.subr.bf16.mxu0 0
  %1330 = vmatpush1.bf16.msra.mxu0 %v1292
  %1331 = vmatprep.subr.bf16.mxu0 0
  %1332 = vmatpush1.bf16.msra.mxu0 %v1293
  %1333 = vmatprep.subr.bf16.mxu0 0
  %1334 = vmatpush1.bf16.msra.mxu0 %v1294
  %1335 = vmatprep.subr.bf16.mxu0 0
  %1336 = vmatpush1.bf16.msra.mxu0 %v1295
  %1337 = vmatprep.subr.bf16.mxu0 0
  %1338 = vmatpush1.bf16.msra.mxu0 %v1296
  %1339 = vmatprep.subr.bf16.mxu0 0
  %1340 = vmatpush1.bf16.msra.mxu0 %v1297
  %1341 = vmatprep.subr.bf16.mxu0 0
  %1342 = vmatpush1.bf16.msra.mxu0 %v1298
  %1343 = vmatprep.subr.bf16.mxu0 0
  %1344 = vmatpush1.bf16.msra.mxu0 %v1299
  %1345 = vmatprep.subr.bf16.mxu0 0
  %1346 = vmatpush1.bf16.msra.mxu0 %v1300
  %1347 = vmatprep.subr.bf16.mxu0 0
  %1348 = vmatpush1.bf16.msra.mxu0 %v1301
  %1349 = vmatprep.subr.bf16.mxu0 0
  %1350 = vmatpush1.bf16.msra.mxu0 %v1302
  %1351 = vmatprep.mubr.bf16.mxu0 %v1169
  %1352 = vmatmul.mubr.bf16.gmra.mrb[0].mxu0 %v1168
  %v1353 = vpop.f32.mrb[0].mxu0
  %v1354 = vadd.f32 %v1221, %v1353
  %v1355 = vpop.f32.mrb[0].mxu0
  %v1356 = vpop.f32.mrb[0].mxu0
  %v1357 = vadd.f32 %v1221, %v1356
  %v1358 = vpop.f32.mrb[0].mxu0
  %1359 = vmatprep.mubr.bf16.mxu0 %v1171
  %1360 = vmatmul.mubr.bf16.gmra.mrb[0].mxu0 %v1170
  %v1361 = vpop.f32.mrb[0].mxu0
  %v1362 = vadd.f32 %v1221, %v1361
  %v1363 = vpop.f32.mrb[0].mxu0
  %v1364 = vpop.f32.mrb[0].mxu0
  %v1365 = vadd.f32 %v1221, %v1364
  %v1366 = vpop.f32.mrb[0].mxu0
  %1367 = vmatprep.mubr.bf16.mxu0 %v1173
  %1368 = vmatmul.mubr.bf16.gmra.mrb[0].mxu0 %v1172
  %v1369 = vpop.f32.mrb[0].mxu0
  %v1370 = vadd.f32 %v1221, %v1369
  %v1371 = vpop.f32.mrb[0].mxu0
  %v1372 = vpop.f32.mrb[0].mxu0
  %v1373 = vadd.f32 %v1221, %v1372
  %v1374 = vpop.f32.mrb[0].mxu0
  %1375 = vmatprep.mubr.bf16.mxu0 %v1175
  %1376 = vmatmul.mubr.bf16.gmra.mrb[0].mxu0 %v1174
  %v1377 = vpop.f32.mrb[0].mxu0
  %v1378 = vadd.f32 %v1221, %v1377
  %v1379 = vpop.f32.mrb[0].mxu0
  %v1380 = vpop.f32.mrb[0].mxu0
  %v1381 = vadd.f32 %v1221, %v1380
  %v1382 = vpop.f32.mrb[0].mxu0
  %1383 = vmatprep.mubr.bf16.mxu0 %v1177
  %1384 = vmatmul.mubr.bf16.gmra.mrb[0].mxu0 %v1176
  %v1385 = vpop.f32.mrb[0].mxu0
  %v1386 = vadd.f32 %v1221, %v1385
  %v1387 = vpop.f32.mrb[0].mxu0
  %v1388 = vpop.f32.mrb[0].mxu0
  %v1389 = vadd.f32 %v1221, %v1388
  %v1390 = vpop.f32.mrb[0].mxu0
  %1391 = vmatprep.mubr.bf16.mxu0 %v1179
  %1392 = vmatmul.mubr.bf16.gmra.mrb[0].mxu0 %v1178
  %v1393 = vpop.f32.mrb[0].mxu0
  %v1394 = vadd.f32 %v1221, %v1393
  %v1395 = vpop.f32.mrb[0].mxu0
  %v1396 = vpop.f32.mrb[0].mxu0
  %v1397 = vadd.f32 %v1221, %v1396
  %v1398 = vpop.f32.mrb[0].mxu0
  %1399 = vmatprep.mubr.bf16.mxu0 %v1181
  %1400 = vmatmul.mubr.bf16.gmra.mrb[0].mxu0 %v1180
  %v1401 = vpop.f32.mrb[0].mxu0
  %v1402 = vadd.f32 %v1221, %v1401
  %v1403 = vpop.f32.mrb[0].mxu0
  %v1404 = vpop.f32.mrb[0].mxu0
  %v1405 = vadd.f32 %v1221, %v1404
  %v1406 = vpop.f32.mrb[0].mxu0
  %1407 = vmatprep.mubr.bf16.mxu0 %v1183
  %1408 = vmatmul.mubr.bf16.gmra.mrb[0].mxu0 %v1182
  %v1409 = vpop.f32.mrb[0].mxu0
  %v1410 = vadd.f32 %v1221, %v1409
  %v1411 = vpop.f32.mrb[0].mxu0
  %v1412 = vpop.f32.mrb[0].mxu0
  %v1413 = vadd.f32 %v1221, %v1412
  %v1414 = vpop.f32.mrb[0].mxu0
  %1415 = vdwg.mxu0
  %v1416 = vmax.f32 %v1354, 0.0
  %v1417 = vmax.f32 %v1357, 0.0
  %v1418 = vmax.f32 %v1362, 0.0
  %v1419 = vmax.f32 %v1365, 0.0
  %v1420 = vmax.f32 %v1370, 0.0
  %v1421 = vmax.f32 %v1373, 0.0
  %v1422 = vmax.f32 %v1378, 0.0
  %v1423 = vmax.f32 %v1381, 0.0
  %v1424 = vmax.f32 %v1386, 0.0
  %v1425 = vmax.f32 %v1389, 0.0
  %v1426 = vmax.f32 %v1394, 0.0
  %v1427 = vmax.f32 %v1397, 0.0
  %v1428 = vmax.f32 %v1402, 0.0
  %v1429 = vmax.f32 %v1405, 0.0
  %v1430 = vmax.f32 %v1410, 0.0
  %v1431 = vmax.f32 %v1413, 0.0
  %v1432 = vpack.c.bf16 %v1417, %v1416
  %v1433 = vpack.c.bf16 %v1419, %v1418
  %v1434 = vpack.c.bf16 %v1421, %v1420
  %v1435 = vpack.c.bf16 %v1423, %v1422
  %v1436 = vpack.c.bf16 %v1425, %v1424
  %v1437 = vpack.c.bf16 %v1427, %v1426
  %v1438 = vpack.c.bf16 %v1429, %v1428
  %v1439 = vpack.c.bf16 %v1431, %v1430
  %v1440 = vld [vmem:[%s7] sm:$0xf]
  %v1441 = vld [vmem:[%s7 + $0x4] sm:$0xf]
  %v1442 = vld [vmem:[%s7 + $0x8] sm:$0xf]
  %v1443 = vld [vmem:[%s7 + $0xc] sm:$0xf]
  %v1444 = vld [vmem:[%s7 + $0x10] sm:$0xf]
  %v1445 = vld [vmem:[%s7 + $0x14] sm:$0xf]
  %v1446 = vld [vmem:[%s7 + $0x18] sm:$0xf]
  %v1447 = vld [vmem:[%s7 + $0x1c] sm:$0xf]
  %v1448 = vld [vmem:[%s7 + $0x20] sm:$0xf]
  %v1449 = vld [vmem:[%s7 + $0x24] sm:$0xf]
  %v1450 = vld [vmem:[%s7 + $0x28] sm:$0xf]
  %v1451 = vld [vmem:[%s7 + $0x2c] sm:$0xf]
  %v1452 = vld [vmem:[%s7 + $0x30] sm:$0xf]
  %v1453 = vld [vmem:[%s7 + $0x34] sm:$0xf]
  %v1454 = vld [vmem:[%s7 + $0x38] sm:$0xf]
  %v1455 = vld [vmem:[%s7 + $0x3c] sm:$0xf]
  %v1456 = vld [vmem:[%s8] sm:$0x1]
  %v1458 = vlaneseq
  %v1459 = vshrl.u32 %v1458, 7
  %v1460 = vsub.s32 0, %v1459
  %v1461 = vrot.slane %v1456, %v1460
  %v1479 = vunpack.c.l.b16 %v1440
  %v1480 = vunpack.c.l.b16 %v1441
  %v1481 = vunpack.c.l.b16 %v1442
  %v1482 = vunpack.c.l.b16 %v1443
  %v1483 = vunpack.c.l.b16 %v1444
  %v1484 = vunpack.c.l.b16 %v1445
  %v1485 = vunpack.c.l.b16 %v1446
  %v1486 = vunpack.c.l.b16 %v1447
  %v1487 = vunpack.c.l.b16 %v1448
  %v1488 = vunpack.c.l.b16 %v1449
  %v1489 = vunpack.c.l.b16 %v1450
  %v1490 = vunpack.c.l.b16 %v1451
  %v1491 = vunpack.c.l.b16 %v1452
  %v1492 = vunpack.c.l.b16 %v1453
  %v1493 = vunpack.c.l.b16 %v1454
  %v1494 = vunpack.c.l.b16 %v1455
  %v1495 = vpack.c.b16 %v1480, %v1479
  %v1496 = vpack.c.b16 %v1482, %v1481
  %v1497 = vpack.c.b16 %v1484, %v1483
  %v1498 = vpack.c.b16 %v1486, %v1485
  %v1499 = vpack.c.b16 %v1488, %v1487
  %v1500 = vpack.c.b16 %v1490, %v1489
  %v1501 = vpack.c.b16 %v1492, %v1491
  %v1502 = vpack.c.b16 %v1494, %v1493
  %1511 = vmatprep.subr.bf16.mxu0 0
  %1512 = vmatpush1.bf16.msra.mxu0 %v1495
  %1513 = vmatprep.subr.bf16.mxu0 0
  %1514 = vmatpush1.bf16.msra.mxu0 %v1496
  %1515 = vmatprep.subr.bf16.mxu0 0
  %1516 = vmatpush1.bf16.msra.mxu0 %v1497
  %1517 = vmatprep.subr.bf16.mxu0 0
  %1518 = vmatpush1.bf16.msra.mxu0 %v1498
  %1519 = vmatprep.subr.bf16.mxu0 0
  %1520 = vmatpush1.bf16.msra.mxu0 %v1499
  %1521 = vmatprep.subr.bf16.mxu0 0
  %1522 = vmatpush1.bf16.msra.mxu0 %v1500
  %1523 = vmatprep.subr.bf16.mxu0 0
  %1524 = vmatpush1.bf16.msra.mxu0 %v1501
  %1525 = vmatprep.subr.bf16.mxu0 0
  %1526 = vmatpush1.bf16.msra.mxu0 %v1502
  %1527 = vmatprep.subr.bf16.mxu0 0
  %1528 = vmatpush1.bf16.msra.mxu0 0
  %1529 = vmatprep.subr.bf16.mxu0 0
  %1530 = vmatpush1.bf16.msra.mxu0 0
  %1531 = vmatprep.subr.bf16.mxu0 0
  %1532 = vmatpush1.bf16.msra.mxu0 0
  %1533 = vmatprep.subr.bf16.mxu0 0
  %1534 = vmatpush1.bf16.msra.mxu0 0
  %1535 = vmatprep.subr.bf16.mxu0 0
  %1536 = vmatpush1.bf16.msra.mxu0 0
  %1537 = vmatprep.subr.bf16.mxu0 0
  %1538 = vmatpush1.bf16.msra.mxu0 0
  %1539 = vmatprep.subr.bf16.mxu0 0
  %1540 = vmatpush1.bf16.msra.mxu0 0
  %1541 = vmatprep.subr.bf16.mxu0 0
  %1542 = vmatpush1.bf16.msra.mxu0 0
  %1543 = vmatprep.mubr.bf16.mxu0 0
  %1544 = vmatmul.mubr.bf16.gmra.mrb[0].mxu0 %v1432
  %v1545 = vpop.f32.mrb[0].mxu0
  %v1546 = vadd.f32 %v1461, %v1545
  %v1547 = vpop.f32.mrb[0].mxu0
  %v1548 = vpop.f32.mrb[0].mxu0
  %v1549 = vadd.f32 %v1461, %v1548
  %v1550 = vpop.f32.mrb[0].mxu0
  %1551 = vmatprep.mubr.bf16.mxu0 0
  %1552 = vmatmul.mubr.bf16.gmra.mrb[0].mxu0 %v1433
  %v1553 = vpop.f32.mrb[0].mxu0
  %v1554 = vadd.f32 %v1461, %v1553
  %v1555 = vpop.f32.mrb[0].mxu0
  %v1556 = vpop.f32.mrb[0].mxu0
  %v1557 = vadd.f32 %v1461, %v1556
  %v1558 = vpop.f32.mrb[0].mxu0
  %1559 = vmatprep.mubr.bf16.mxu0 0
  %1560 = vmatmul.mubr.bf16.gmra.mrb[0].mxu0 %v1434
  %v1561 = vpop.f32.mrb[0].mxu0
  %v1562 = vadd.f32 %v1461, %v1561
  %v1563 = vpop.f32.mrb[0].mxu0
  %v1564 = vpop.f32.mrb[0].mxu0
  %v1565 = vadd.f32 %v1461, %v1564
  %v1566 = vpop.f32.mrb[0].mxu0
  %1567 = vmatprep.mubr.bf16.mxu0 0
  %1568 = vmatmul.mubr.bf16.gmra.mrb[0].mxu0 %v1435
  %v1569 = vpop.f32.mrb[0].mxu0
  %v1570 = vadd.f32 %v1461, %v1569
  %v1571 = vpop.f32.mrb[0].mxu0
  %v1572 = vpop.f32.mrb[0].mxu0
  %v1573 = vadd.f32 %v1461, %v1572
  %v1574 = vpop.f32.mrb[0].mxu0
  %1575 = vmatprep.mubr.bf16.mxu0 0
  %1576 = vmatmul.mubr.bf16.gmra.mrb[0].mxu0 %v1436
  %v1577 = vpop.f32.mrb[0].mxu0
  %v1578 = vadd.f32 %v1461, %v1577
  %v1579 = vpop.f32.mrb[0].mxu0
  %v1580 = vpop.f32.mrb[0].mxu0
  %v1581 = vadd.f32 %v1461, %v1580
  %v1582 = vpop.f32.mrb[0].mxu0
  %1583 = vmatprep.mubr.bf16.mxu0 0
  %1584 = vmatmul.mubr.bf16.gmra.mrb[0].mxu0 %v1437
  %v1585 = vpop.f32.mrb[0].mxu0
  %v1586 = vadd.f32 %v1461, %v1585
  %v1587 = vpop.f32.mrb[0].mxu0
  %v1588 = vpop.f32.mrb[0].mxu0
  %v1589 = vadd.f32 %v1461, %v1588
  %v1590 = vpop.f32.mrb[0].mxu0
  %1591 = vmatprep.mubr.bf16.mxu0 0
  %1592 = vmatmul.mubr.bf16.gmra.mrb[0].mxu0 %v1438
  %v1593 = vpop.f32.mrb[0].mxu0
  %v1594 = vadd.f32 %v1461, %v1593
  %v1595 = vpop.f32.mrb[0].mxu0
  %v1596 = vpop.f32.mrb[0].mxu0
  %v1597 = vadd.f32 %v1461, %v1596
  %v1598 = vpop.f32.mrb[0].mxu0
  %1599 = vmatprep.mubr.bf16.mxu0 0
  %1600 = vmatmul.mubr.bf16.gmra.mrb[0].mxu0 %v1439
  %v1601 = vpop.f32.mrb[0].mxu0
  %v1602 = vadd.f32 %v1461, %v1601
  %v1603 = vpop.f32.mrb[0].mxu0
  %v1604 = vpop.f32.mrb[0].mxu0
  %v1605 = vadd.f32 %v1461, %v1604
  %v1606 = vpop.f32.mrb[0].mxu0
  %1607 = vdwg.mxu0
  %v1608 = vmax.f32 %v1546, 0.0
  %v1609 = vmax.f32 %v1549, 0.0
  %v1610 = vmax.f32 %v1554, 0.0
  %v1611 = vmax.f32 %v1557, 0.0
  %v1612 = vmax.f32 %v1562, 0.0
  %v1613 = vmax.f32 %v1565, 0.0
  %v1614 = vmax.f32 %v1570, 0.0
  %v1615 = vmax.f32 %v1573, 0.0
  %v1616 = vmax.f32 %v1578, 0.0
  %v1617 = vmax.f32 %v1581, 0.0
  %v1618 = vmax.f32 %v1586, 0.0
  %v1619 = vmax.f32 %v1589, 0.0
  %v1620 = vmax.f32 %v1594, 0.0
  %v1621 = vmax.f32 %v1597, 0.0
  %v1622 = vmax.f32 %v1602, 0.0
  %v1623 = vmax.f32 %v1605, 0.0
  %v1624 = vld [vmem:[%s9] sm:$0x1]
  %v1626 = vlaneseq
  %v1627 = vshrl.u32 %v1626, 7
  %v1628 = vsub.s32 0, %v1627
  %v1629 = vrot.slane %v1624, %v1628
  %v1631 = vmul.f32 %v1608, %v1629
  %v1632 = vmul.f32 %v1609, %v1629
  %v1633 = vmul.f32 %v1610, %v1629
  %v1634 = vmul.f32 %v1611, %v1629
  %v1635 = vmul.f32 %v1612, %v1629
  %v1636 = vmul.f32 %v1613, %v1629
  %v1637 = vmul.f32 %v1614, %v1629
  %v1638 = vmul.f32 %v1615, %v1629
  %v1639 = vmul.f32 %v1616, %v1629
  %v1640 = vmul.f32 %v1617, %v1629
  %v1641 = vmul.f32 %v1618, %v1629
  %v1642 = vmul.f32 %v1619, %v1629
  %v1643 = vmul.f32 %v1620, %v1629
  %v1644 = vmul.f32 %v1621, %v1629
  %v1645 = vmul.f32 %v1622, %v1629
  %v1646 = vmul.f32 %v1623, %v1629
  %vm1647 = vcmask 523264
  %v1648 = vsel %vm1647, %v1631, 0.0
  %1649 = vadd.xlane.f32.xlu0 %v1648
  %v1650 = vpop.xlane.xlu0 %1649
  %v1651 = vsel %vm1647, %v1632, 0.0
  %1652 = vadd.xlane.f32.xlu0 %v1651
  %v1653 = vpop.xlane.xlu0 %1652
  %v1654 = vsel %vm1647, %v1633, 0.0
  %1655 = vadd.xlane.f32.xlu0 %v1654
  %v1656 = vpop.xlane.xlu0 %1655
  %v1657 = vsel %vm1647, %v1634, 0.0
  %1658 = vadd.xlane.f32.xlu0 %v1657
  %v1659 = vpop.xlane.xlu0 %1658
  %v1660 = vsel %vm1647, %v1635, 0.0
  %1661 = vadd.xlane.f32.xlu0 %v1660
  %v1662 = vpop.xlane.xlu0 %1661
  %v1663 = vsel %vm1647, %v1636, 0.0
  %1664 = vadd.xlane.f32.xlu0 %v1663
  %v1665 = vpop.xlane.xlu0 %1664
  %v1666 = vsel %vm1647, %v1637, 0.0
  %1667 = vadd.xlane.f32.xlu0 %v1666
  %v1668 = vpop.xlane.xlu0 %1667
  %v1669 = vsel %vm1647, %v1638, 0.0
  %1670 = vadd.xlane.f32.xlu0 %v1669
  %v1671 = vpop.xlane.xlu0 %1670
  %v1672 = vsel %vm1647, %v1639, 0.0
  %1673 = vadd.xlane.f32.xlu0 %v1672
  %v1674 = vpop.xlane.xlu0 %1673
  %v1675 = vsel %vm1647, %v1640, 0.0
  %1676 = vadd.xlane.f32.xlu0 %v1675
  %v1677 = vpop.xlane.xlu0 %1676
  %v1678 = vsel %vm1647, %v1641, 0.0
  %1679 = vadd.xlane.f32.xlu0 %v1678
  %v1680 = vpop.xlane.xlu0 %1679
  %v1681 = vsel %vm1647, %v1642, 0.0
  %1682 = vadd.xlane.f32.xlu0 %v1681
  %v1683 = vpop.xlane.xlu0 %1682
  %v1684 = vsel %vm1647, %v1643, 0.0
  %1685 = vadd.xlane.f32.xlu0 %v1684
  %v1686 = vpop.xlane.xlu0 %1685
  %v1687 = vsel %vm1647, %v1644, 0.0
  %1688 = vadd.xlane.f32.xlu0 %v1687
  %v1689 = vpop.xlane.xlu0 %1688
  %v1690 = vsel %vm1647, %v1645, 0.0
  %1691 = vadd.xlane.f32.xlu0 %v1690
  %v1692 = vpop.xlane.xlu0 %1691
  %v1693 = vsel %vm1647, %v1646, 0.0
  %1694 = vadd.xlane.f32.xlu0 %v1693
  %v1695 = vpop.xlane.xlu0 %1694
  %v1696 = vld [vmem:[#allocation2] sm:$0x1]
  %1698 = vset.pattern.permute.xlu0 0
  %1699 = vperm.xlu0 %1698, %v1696
  %v1700 = vpop.permute.xlu0 %1699
  %v1702 = vlaneseq
  %v1703 = vshrl.u32 %v1702, 7
  %v1704 = vsub.s32 0, %v1703
  %v1705 = vrot.slane %v1700, %v1704
  %v1706 = vadd.f32 %v1650, %v1705
  %v1707 = vadd.f32 %v1653, %v1705
  %v1708 = vadd.f32 %v1656, %v1705
  %v1709 = vadd.f32 %v1659, %v1705
  %v1710 = vadd.f32 %v1662, %v1705
  %v1711 = vadd.f32 %v1665, %v1705
  %v1712 = vadd.f32 %v1668, %v1705
  %v1713 = vadd.f32 %v1671, %v1705
  %v1714 = vadd.f32 %v1674, %v1705
  %v1715 = vadd.f32 %v1677, %v1705
  %v1716 = vadd.f32 %v1680, %v1705
  %v1717 = vadd.f32 %v1683, %v1705
  %v1718 = vadd.f32 %v1686, %v1705
  %v1719 = vadd.f32 %v1689, %v1705
  %v1720 = vadd.f32 %v1692, %v1705
  %v1721 = vadd.f32 %v1695, %v1705
  %v1738 = vlaneseq
  %v1739 = vand.u32 %v1738, 127
  %v1740 = vlaneseq
  %v1741 = vshrl.u32 %v1740, 7
  %v1742 = vsub.s32 %v1739, %v1741
  %v1743 = vrot.slane %v1706, %v1742
  %v1744 = vadd.s32 %v1739, 4294967288
  %v1745 = vlaneseq
  %v1746 = vshrl.u32 %v1745, 7
  %v1747 = vsub.s32 %v1744, %v1746
  %v1748 = vrot.slane %v1707, %v1747
  %vm1749 = vcmask 130112
  %v1750 = vsel %vm1749, %v1748, %v1743
  %v1751 = vadd.s32 %v1739, 4294967280
  %v1752 = vlaneseq
  %v1753 = vshrl.u32 %v1752, 7
  %v1754 = vsub.s32 %v1751, %v1753
  %v1755 = vrot.slane %v1708, %v1754
  %vm1756 = vcmask 195712
  %v1757 = vsel %vm1756, %v1755, %v1750
  %v1758 = vadd.s32 %v1739, 4294967272
  %v1759 = vlaneseq
  %v1760 = vshrl.u32 %v1759, 7
  %v1761 = vsub.s32 %v1758, %v1760
  %v1762 = vrot.slane %v1709, %v1761
  %vm1763 = vcmask 261312
  %v1764 = vsel %vm1763, %v1762, %v1757
  %v1765 = vadd.s32 %v1739, 4294967264
  %v1766 = vlaneseq
  %v1767 = vshrl.u32 %v1766, 7
  %v1768 = vsub.s32 %v1765, %v1767
  %v1769 = vrot.slane %v1710, %v1768
  %vm1770 = vcmask 326912
  %v1771 = vsel %vm1770, %v1769, %v1764
  %v1772 = vadd.s32 %v1739, 4294967256
  %v1773 = vlaneseq
  %v1774 = vshrl.u32 %v1773, 7
  %v1775 = vsub.s32 %v1772, %v1774
  %v1776 = vrot.slane %v1711, %v1775
  %vm1777 = vcmask 392512
  %v1778 = vsel %vm1777, %v1776, %v1771
  %v1779 = vadd.s32 %v1739, 4294967248
  %v1780 = vlaneseq
  %v1781 = vshrl.u32 %v1780, 7
  %v1782 = vsub.s32 %v1779, %v1781
  %v1783 = vrot.slane %v1712, %v1782
  %vm1784 = vcmask 458112
  %v1785 = vsel %vm1784, %v1783, %v1778
  %v1786 = vadd.s32 %v1739, 4294967240
  %v1787 = vlaneseq
  %v1788 = vshrl.u32 %v1787, 7
  %v1789 = vsub.s32 %v1786, %v1788
  %v1790 = vrot.slane %v1713, %v1789
  %vm1791 = vcmask 523712
  %v1792 = vsel %vm1791, %v1790, %v1785
  %v1793 = vadd.s32 %v1739, 4294967232
  %v1794 = vlaneseq
  %v1795 = vshrl.u32 %v1794, 7
  %v1796 = vsub.s32 %v1793, %v1795
  %v1797 = vrot.slane %v1714, %v1796
  %vm1798 = vcmask 589312
  %v1799 = vsel %vm1798, %v1797, %v1792
  %v1800 = vadd.s32 %v1739, 4294967224
  %v1801 = vlaneseq
  %v1802 = vshrl.u32 %v1801, 7
  %v1803 = vsub.s32 %v1800, %v1802
  %v1804 = vrot.slane %v1715, %v1803
  %vm1805 = vcmask 654912
  %v1806 = vsel %vm1805, %v1804, %v1799
  %v1807 = vadd.s32 %v1739, 4294967216
  %v1808 = vlaneseq
  %v1809 = vshrl.u32 %v1808, 7
  %v1810 = vsub.s32 %v1807, %v1809
  %v1811 = vrot.slane %v1716, %v1810
  %vm1812 = vcmask 720512
  %v1813 = vsel %vm1812, %v1811, %v1806
  %v1814 = vadd.s32 %v1739, 4294967208
  %v1815 = vlaneseq
  %v1816 = vshrl.u32 %v1815, 7
  %v1817 = vsub.s32 %v1814, %v1816
  %v1818 = vrot.slane %v1717, %v1817
  %vm1819 = vcmask 786112
  %v1820 = vsel %vm1819, %v1818, %v1813
  %v1821 = vadd.s32 %v1739, 4294967200
  %v1822 = vlaneseq
  %v1823 = vshrl.u32 %v1822, 7
  %v1824 = vsub.s32 %v1821, %v1823
  %v1825 = vrot.slane %v1718, %v1824
  %vm1826 = vcmask 851712
  %v1827 = vsel %vm1826, %v1825, %v1820
  %v1828 = vadd.s32 %v1739, 4294967192
  %v1829 = vlaneseq
  %v1830 = vshrl.u32 %v1829, 7
  %v1831 = vsub.s32 %v1828, %v1830
  %v1832 = vrot.slane %v1719, %v1831
  %vm1833 = vcmask 917312
  %v1834 = vsel %vm1833, %v1832, %v1827
  %v1835 = vadd.s32 %v1739, 4294967184
  %v1836 = vlaneseq
  %v1837 = vshrl.u32 %v1836, 7
  %v1838 = vsub.s32 %v1835, %v1837
  %v1839 = vrot.slane %v1720, %v1838
  %vm1840 = vcmask 982912
  %v1841 = vsel %vm1840, %v1839, %v1834
  %v1842 = vadd.s32 %v1739, 4294967176
  %v1843 = vlaneseq
  %v1844 = vshrl.u32 %v1843, 7
  %v1845 = vsub.s32 %v1842, %v1844
  %v1846 = vrot.slane %v1721, %v1845
  %vm1847 = vcmask 1048512
  %v1848 = vsel %vm1847, %v1846, %v1841
  %1850 = vst [vmem:[%s11] sm:$0x1] %v1848
  // Predicated region
  $region46: #{complex_linear_regression.1} parent=0 // pred_check
    _
  $region47: #{complex_linear_regression.1} parent=0 // pred_check_branch
    %1852 = sbr.rel (0) target = $region49
  $region48: #{complex_linear_regression.1} parent=0 // pred_region
    _
  $region49: #{complex_linear_regression.1} parent=0 // pred_fallthru
    _
  // Predicated region
  $region50: #{complex_linear_regression.1} parent=0 // pred_check
    _
  $region51: #{complex_linear_regression.1} parent=0 // pred_check_branch
    %1854 = sbr.rel (0) target = $region53
  $region52: #{complex_linear_regression.1} parent=0 // pred_region
    _
  $region53: #{complex_linear_regression.1} parent=0 // pred_fallthru
    _

</llo_original>
